<compile_context>
chip_gen: v7x
topology: tpu7x:2x2x1
jax: 0.10.0
libtpu: 0.0.40
codegen_flags: <defaults>
</compile_context>

<pallas_src>
import functools

import jax
import jax.numpy as jnp
from jax.experimental import pallas as pl
from jax.experimental.pallas import tpu as pltpu

LANE = 128


def _round_up(n, m):
    return ((n + m - 1) // m) * m


def _pick_batch_tile(batch, block_b):
    rb = _round_up(max(batch, 1), 16)
    bt = min(block_b, rb)
    # If the whole (reasonably large) batch fits in one tile, split it in two so
    # v7x can shard across its 2 TensorCores; the extra step costs ~0.35 us on
    # single-TC chips (v5e/v6e), which is negligible.
    if bt == rb and rb >= 256:
        bt = _round_up(rb // 2, 16)
    return bt


def _gsenn_kernel(n_concepts, n_classes, h_pad, c_pad,
                  x_ref,
                  w1p1_ref, b1c1_ref,        # fused [enc L1 | param L1]
                  w2_ref, b2_ref,            # enc L2  -> concepts h
                  w3_ref, b3_ref,            # dec L1
                  w4_ref, b4_ref,            # dec L2  -> x_tilde
                  p2_ref, c2_ref,            # param L2 -> thetas (class lanes padded to 128)
                  sel_ref,                   # (Kp, K*128) 0/1 concept->slab selection
                  out_ref, recons_ref, h_ref):
    x = x_ref[...].astype(jnp.bfloat16)                             # (Bt, D) f32 -> bf16 in vregs

    # ---- fused first layer (encoder + parametrizer share x) -> one MXU pass ----
    eq = jnp.dot(x, w1p1_ref[...], preferred_element_type=jnp.float32)
    eq = jnp.maximum(eq + b1c1_ref[...], 0.0)                       # (Bt, 2*Hp) f32
    e1 = eq[:, :h_pad].astype(jnp.bfloat16)                         # lane-aligned split
    q1 = eq[:, h_pad:].astype(jnp.bfloat16)

    # ---- conceptizer encoder L2: concepts h (padded concept lanes are exactly 0) ----
    h = jnp.dot(e1, w2_ref[...], preferred_element_type=jnp.float32) + b2_ref[...]
    h16 = h.astype(jnp.bfloat16)
    h_ref[...] = h16                                                # (Bt, Kp) bf16 writeback

    # ---- conceptizer decoder: x_tilde = self.recons ----
    d1 = jnp.dot(h16, w3_ref[...], preferred_element_type=jnp.float32) + b3_ref[...]
    d1 = jnp.maximum(d1, 0.0)
    x_tilde = jnp.dot(d1.astype(jnp.bfloat16), w4_ref[...],
                      preferred_element_type=jnp.float32) + b4_ref[...]
    recons_ref[...] = x_tilde.astype(jnp.bfloat16)                  # (Bt, D) bf16 writeback

    # ---- parametrizer L2: thetas laid out as (Bt, K * 128) ----
    th = jnp.dot(q1, p2_ref[...], preferred_element_type=jnp.float32) + c2_ref[...]

    # ---- additive aggregator: z[b,c] = sum_k thetas[b,k,c] * h[b,k]
    #      h broadcast into per-concept 128-lane slabs via one small MXU matmul
    #      (no cross-lane broadcasts), then K full-vreg VPU FMAs. ----
    hb = jnp.dot(h16, sel_ref[...], preferred_element_type=jnp.float32)  # (Bt, K*128)
    z = th[:, 0:c_pad] * hb[:, 0:c_pad]
    for k in range(1, n_concepts):                                  # static, tiny K
        z = z + th[:, k * c_pad:(k + 1) * c_pad] * hb[:, k * c_pad:(k + 1) * c_pad]

    # ---- F.log_softmax over the first n_classes lanes (pad lanes masked out) ----
    lane_ids = jax.lax.broadcasted_iota(jnp.int32, z.shape, 1)
    valid = lane_ids < n_classes
    zm = jnp.where(valid, z, -jnp.inf)
    m = jnp.max(zm, axis=1, keepdims=True)
    ex = jnp.exp(zm - m)                                            # pad lanes: exp(-inf) = 0
    lse = jnp.log(jnp.sum(ex, axis=1, keepdims=True))
    out_ref[...] = (z - m) - lse                                    # (Bt, 128) lane-dense


def prepare_params(params, n_concepts, n_classes):
    """One-time packing: pad to lane boundaries, fuse [enc-L1 | param-L1], build
    the concept->slab selection matrix, cast MXU operands to bf16.

    Call this ONCE, outside the jitted forward, and pass the packed tuple in.
    Expects weights in (in, out) layout; transpose torch nn.Linear .weight first.
    """
    (w1, b1, w2, b2, w3, b3, w4, b4, p1, c1, p2, c2) = params
    D, H = w1.shape
    Hp = _round_up(H, LANE)           # hidden dim padded to full lanes
    Kp = _round_up(n_concepts, LANE)  # concept dim padded to full lanes
    Cp = LANE                         # class lanes per concept
    assert n_classes <= Cp

    def padw(w, r, c):
        out = jnp.zeros((r, c), jnp.float32)
        return out.at[:w.shape[0], :w.shape[1]].set(w.astype(jnp.float32))

    # fused first layer: [w1 | p1] padded to (D, 2*Hp), bf16 for the MXU
    w1p1 = jnp.concatenate([padw(w1, D, Hp), padw(p1, D, Hp)], axis=1).astype(jnp.bfloat16)
    b1c1 = jnp.concatenate([padw(b1, 1, Hp), padw(c1, 1, Hp)], axis=1)      # f32

    w2p = padw(w2, Hp, Kp).astype(jnp.bfloat16)
    b2p = padw(b2, 1, Kp)
    w3p = padw(w3, Kp, Hp).astype(jnp.bfloat16)
    b3p = padw(b3, 1, Hp)
    w4p = padw(w4, Hp, D).astype(jnp.bfloat16)
    b4p = b4.astype(jnp.float32).reshape(1, D)

    # parametrizer L2: scatter each concept's C class columns into its own
    # 128-lane slab so the aggregator slices are lane-aligned.
    # TODO(synk): if profiling shows the p2 block dominates, pack K*C into a
    # single 128-lane slab instead (needs a segmented lane reduce).
    p2p = jnp.zeros((Hp, n_concepts * Cp), jnp.float32)
    c2p = jnp.zeros((1, n_concepts * Cp), jnp.float32)
    for k in range(n_concepts):
        p2p = p2p.at[:H, k * Cp:k * Cp + n_classes].set(
            p2[:, k * n_classes:(k + 1) * n_classes].astype(jnp.float32))
        c2p = c2p.at[:, k * Cp:k * Cp + n_classes].set(
            c2[:, k * n_classes:(k + 1) * n_classes].astype(jnp.float32))
    p2p = p2p.astype(jnp.bfloat16)

    # 0/1 selection matrix: broadcasts h[:, k] to all 128 lanes of slab k via MXU.
    sel = jnp.zeros((Kp, n_concepts * Cp), jnp.float32)
    for k in range(n_concepts):
        sel = sel.at[k, k * Cp:(k + 1) * Cp].set(1.0)
    sel = sel.astype(jnp.bfloat16)

    packed = (w1p1, b1c1, w2p, b2p, w3p, b3p, w4p, b4p, p2p, c2p, sel)
    return packed


def gsenn_forward(x_nchw, packed, *, n_concepts, n_classes, block_b=512):
    """Runs GSENN.forward; returns (out, recons, h_norm_l1, concepts).

    `packed` must come from prepare_params() (call it once, outside jit).
    recons is returned in bf16 (intentional: halves the dominant HBM writeback);
    cast to f32 only if a downstream consumer needs it.
    """
    B = x_nchw.shape[0]
    D = 1
    for s in x_nchw.shape[1:]:
        D *= int(s)
    x = x_nchw.reshape(B, D).astype(jnp.float32)      # NCHW -> (B, D), torch .view order

    (w1p1, b1c1, w2p, b2p, w3p, b3p, w4p, b4p, p2p, c2p, sel) = packed
    Hp = w2p.shape[0]
    Kp = w2p.shape[1]
    Cp = LANE
    assert w1p1.shape[0] == D, "packed params do not match input feature dim"

    # batch tiling: pad B up to a multiple of the batch tile
    Bt = _pick_batch_tile(B, block_b)
    Bp = _round_up(B, Bt)
    if Bp != B:
        x = jnp.pad(x, ((0, Bp - B), (0, 0)))

    grid = (Bp // Bt,)

    def batch_spec(ncols):
        return pl.BlockSpec((Bt, ncols), lambda i: (i, 0))

    def const_spec(a):
        # full-array block, constant index -> resident in VMEM, single buffer
        return pl.BlockSpec(a.shape, lambda i: (0, 0), pipeline_mode=pl.Buffered(1))

    kernel = functools.partial(_gsenn_kernel, n_concepts, n_classes, Hp, Cp)

    out_pad, recons_pad, h_out = pl.pallas_call(
        kernel,
        out_shape=(
            jax.ShapeDtypeStruct((Bp, Cp), jnp.float32),     # padded log-probs
            jax.ShapeDtypeStruct((Bp, D), jnp.bfloat16),     # self.recons (bf16 writeback)
            jax.ShapeDtypeStruct((Bp, Kp), jnp.bfloat16),    # padded concepts (self.concepts)
        ),
        grid_spec=pltpu.PrefetchScalarGridSpec(
            num_scalar_prefetch=0,
            grid=grid,
            in_specs=[batch_spec(D)] + [const_spec(a) for a in packed],
            out_specs=[batch_spec(Cp), batch_spec(D), batch_spec(Kp)],
        ),
        compiler_params=pltpu.CompilerParams(
            dimension_semantics=("parallel",),
            vmem_limit_bytes=48 * 1024 * 1024),   # fits v7x's 64 MiB/core with headroom
    )(x, *packed)

    out = out_pad[:B, :n_classes]
    recons = recons_pad[:B]                                     # bf16
    concepts = h_out[:B, :n_concepts].astype(jnp.float32)       # tiny (B, K) cast
    h_norm_l1 = jnp.sum(jnp.abs(concepts))                      # self.h_norm_l1
    return out, recons, h_norm_l1, concepts


def init_params(key, d_in, hdim, n_concepts, n_classes):
    ks = jax.random.split(key, 12)

    def lin(kw, fan_in, fan_out):
        scale = 1.0 / jnp.sqrt(jnp.float32(fan_in))
        return jax.random.uniform(kw, (fan_in, fan_out), jnp.float32, -scale, scale)

    def bias(kb, fan_in, fan_out):
        scale = 1.0 / jnp.sqrt(jnp.float32(fan_in))
        return jax.random.uniform(kb, (1, fan_out), jnp.float32, -scale, scale)

    # conceptizer encoder
    w1, b1 = lin(ks[0], d_in, hdim), bias(ks[1], d_in, hdim)
    w2, b2 = lin(ks[2], hdim, n_concepts), bias(ks[3], hdim, n_concepts)
    # conceptizer decoder
    w3, b3 = lin(ks[4], n_concepts, hdim), bias(ks[5], n_concepts, hdim)
    w4, b4 = lin(ks[6], hdim, d_in), bias(ks[7], hdim, d_in)
    # parametrizer
    p1, c1 = lin(ks[8], d_in, hdim), bias(ks[9], d_in, hdim)
    p2, c2 = lin(ks[10], hdim, n_concepts * n_classes), bias(ks[11], hdim, n_concepts * n_classes)
    return (w1, b1, w2, b2, w3, b3, w4, b4, p1, c1, p2, c2)


if __name__ == "__main__":
    B, Cin, Hs, Ws = 2, 4, 16, 16
    D = Cin * Hs * Ws
    HDIM = 64
    N_CONCEPTS = 5
    N_CLASSES = 10

    key = jax.random.PRNGKey(0)
    kx, kp = jax.random.split(key)
    x = jax.random.normal(kx, (B, Cin, Hs, Ws), dtype=jnp.float32)
    params = init_params(kp, D, HDIM, N_CONCEPTS, N_CLASSES)

    # One-time parameter packing (outside the jitted forward).
    packed = prepare_params(params, N_CONCEPTS, N_CLASSES)
    packed = jax.block_until_ready(packed)

    fwd = jax.jit(functools.partial(gsenn_forward,
                                    n_concepts=N_CONCEPTS, n_classes=N_CLASSES))
    out, recons, hnorm, concepts = fwd(x, packed)
    jax.block_until_ready((out, recons, hnorm, concepts))

    assert out.shape == (B, N_CLASSES)
    assert recons.shape == (B, D)
    assert concepts.shape == (B, N_CONCEPTS)
    # log_softmax rows should sum to ~1 in prob space
    assert bool(jnp.all(jnp.abs(jnp.sum(jnp.exp(out), axis=1) - 1.0) < 1e-3))
    assert bool(jnp.isfinite(hnorm))
    print("KERNEL_OK")
</pallas_src>

<mosaic_0001>
module attributes {stable_mosaic.version = 11 : i64} {
  func.func @_gsenn_kernel(%arg0: i32, %arg1: memref<16x1024xf32, #tpu.memory_space<vmem>>, %arg2: memref<1024x256xbf16, #tpu.memory_space<vmem>>, %arg3: memref<1x256xf32, #tpu.memory_space<vmem>>, %arg4: memref<128x128xbf16, #tpu.memory_space<vmem>>, %arg5: memref<1x128xf32, #tpu.memory_space<vmem>>, %arg6: memref<128x128xbf16, #tpu.memory_space<vmem>>, %arg7: memref<1x128xf32, #tpu.memory_space<vmem>>, %arg8: memref<128x1024xbf16, #tpu.memory_space<vmem>>, %arg9: memref<1x1024xf32, #tpu.memory_space<vmem>>, %arg10: memref<128x640xbf16, #tpu.memory_space<vmem>>, %arg11: memref<1x640xf32, #tpu.memory_space<vmem>>, %arg12: memref<128x640xbf16, #tpu.memory_space<vmem>>, %arg13: memref<16x128xf32, #tpu.memory_space<vmem>>, %arg14: memref<16x1024xbf16, #tpu.memory_space<vmem>>, %arg15: memref<16x128xbf16, #tpu.memory_space<vmem>>) attributes {dimension_semantics = [#tpu.dimension_semantics<parallel>], iteration_bounds = array<i64: 1>, scalar_prefetch = 0 : i64, scratch_operands = 0 : i64, tpu.core_type = #tpu.core_type<tc>, window_params = [{transform_indices = @transform_0, window_bounds = array<i64: 16, 1024>}, {pipeline_mode = #tpu.pipeline_mode<synchronous>, transform_indices = @transform_1, window_bounds = array<i64: 1024, 256>}, {pipeline_mode = #tpu.pipeline_mode<synchronous>, transform_indices = @transform_2, window_bounds = array<i64: 1, 256>}, {pipeline_mode = #tpu.pipeline_mode<synchronous>, transform_indices = @transform_3, window_bounds = array<i64: 128, 128>}, {pipeline_mode = #tpu.pipeline_mode<synchronous>, transform_indices = @transform_4, window_bounds = array<i64: 1, 128>}, {pipeline_mode = #tpu.pipeline_mode<synchronous>, transform_indices = @transform_5, window_bounds = array<i64: 128, 128>}, {pipeline_mode = #tpu.pipeline_mode<synchronous>, transform_indices = @transform_6, window_bounds = array<i64: 1, 128>}, {pipeline_mode = #tpu.pipeline_mode<synchronous>, transform_indices = @transform_7, window_bounds = array<i64: 128, 1024>}, {pipeline_mode = #tpu.pipeline_mode<synchronous>, transform_indices = @transform_8, window_bounds = array<i64: 1, 1024>}, {pipeline_mode = #tpu.pipeline_mode<synchronous>, transform_indices = @transform_9, window_bounds = array<i64: 128, 640>}, {pipeline_mode = #tpu.pipeline_mode<synchronous>, transform_indices = @transform_10, window_bounds = array<i64: 1, 640>}, {pipeline_mode = #tpu.pipeline_mode<synchronous>, transform_indices = @transform_11, window_bounds = array<i64: 128, 640>}, {transform_indices = @transform_12, window_bounds = array<i64: 16, 128>}, {transform_indices = @transform_13, window_bounds = array<i64: 16, 1024>}, {transform_indices = @transform_14, window_bounds = array<i64: 16, 128>}]} {
    %c0 = arith.constant 0 : index
    %c0_0 = arith.constant 0 : index
    %0 = vector.load %arg1[%c0, %c0_0] : memref<16x1024xf32, #tpu.memory_space<vmem>>, vector<16x1024xf32>
    %1 = arith.truncf %0 : vector<16x1024xf32> to vector<16x1024xbf16>
    %c0_1 = arith.constant 0 : index
    %c0_2 = arith.constant 0 : index
    %2 = vector.load %arg2[%c0_1, %c0_2] : memref<1024x256xbf16, #tpu.memory_space<vmem>>, vector<1024x256xbf16>
    %cst = arith.constant dense<0.000000e+00> : vector<16x256xf32>
    %3 = tpu.matmul %1, %2, %cst {dimension_numbers = #tpu.dot_dimension_numbers<[1], [0], [0], [1], [0, 0, 1, 1], [], []>} : vector<16x1024xbf16>, vector<1024x256xbf16>, vector<16x256xf32> -> vector<16x256xf32>
    %c0_3 = arith.constant 0 : index
    %c0_4 = arith.constant 0 : index
    %4 = vector.load %arg3[%c0_3, %c0_4] : memref<1x256xf32, #tpu.memory_space<vmem>>, vector<1x256xf32>
    %5 = vector.broadcast %4 : vector<1x256xf32> to vector<16x256xf32>
    %6 = arith.addf %3, %5 : vector<16x256xf32>
    %cst_5 = arith.constant 0.000000e+00 : f32
    %7 = vector.broadcast %cst_5 : f32 to vector<16x256xf32>
    %8 = arith.maximumf %6, %7 : vector<16x256xf32>
    %9 = vector.extract_strided_slice %8 {offsets = [0, 0], sizes = [16, 128], strides = [1, 1]} : vector<16x256xf32> to vector<16x128xf32>
    %10 = arith.truncf %9 : vector<16x128xf32> to vector<16x128xbf16>
    %11 = vector.extract_strided_slice %8 {offsets = [0, 128], sizes = [16, 128], strides = [1, 1]} : vector<16x256xf32> to vector<16x128xf32>
    %12 = arith.truncf %11 : vector<16x128xf32> to vector<16x128xbf16>
    %c0_6 = arith.constant 0 : index
    %c0_7 = arith.constant 0 : index
    %13 = vector.load %arg4[%c0_6, %c0_7] : memref<128x128xbf16, #tpu.memory_space<vmem>>, vector<128x128xbf16>
    %cst_8 = arith.constant dense<0.000000e+00> : vector<16x128xf32>
    %14 = tpu.matmul %10, %13, %cst_8 {dimension_numbers = #tpu.dot_dimension_numbers<[1], [0], [0], [1], [0, 0, 1, 1], [], []>} : vector<16x128xbf16>, vector<128x128xbf16>, vector<16x128xf32> -> vector<16x128xf32>
    %c0_9 = arith.constant 0 : index
    %c0_10 = arith.constant 0 : index
    %15 = vector.load %arg5[%c0_9, %c0_10] : memref<1x128xf32, #tpu.memory_space<vmem>>, vector<1x128xf32>
    %16 = vector.broadcast %15 : vector<1x128xf32> to vector<16x128xf32>
    %17 = arith.addf %14, %16 : vector<16x128xf32>
    %18 = arith.truncf %17 : vector<16x128xf32> to vector<16x128xbf16>
    %c0_11 = arith.constant 0 : index
    %c0_12 = arith.constant 0 : index
    %19 = vector.load %arg15[%c0_11, %c0_12] : memref<16x128xbf16, #tpu.memory_space<vmem>>, vector<16x128xbf16>
    tpu.vector_store %arg15[%c0_11, %c0_12], %18 {strides = array<i32>} : memref<16x128xbf16, #tpu.memory_space<vmem>>, vector<16x128xbf16>,
    %c0_13 = arith.constant 0 : index
    %c0_14 = arith.constant 0 : index
    %20 = vector.load %arg6[%c0_13, %c0_14] : memref<128x128xbf16, #tpu.memory_space<vmem>>, vector<128x128xbf16>
    %cst_15 = arith.constant dense<0.000000e+00> : vector<16x128xf32>
    %21 = tpu.matmul %18, %20, %cst_15 {dimension_numbers = #tpu.dot_dimension_numbers<[1], [0], [0], [1], [0, 0, 1, 1], [], []>} : vector<16x128xbf16>, vector<128x128xbf16>, vector<16x128xf32> -> vector<16x128xf32>
    %c0_16 = arith.constant 0 : index
    %c0_17 = arith.constant 0 : index
    %22 = vector.load %arg7[%c0_16, %c0_17] : memref<1x128xf32, #tpu.memory_space<vmem>>, vector<1x128xf32>
    %23 = vector.broadcast %22 : vector<1x128xf32> to vector<16x128xf32>
    %24 = arith.addf %21, %23 : vector<16x128xf32>
    %cst_18 = arith.constant 0.000000e+00 : f32
    %25 = vector.broadcast %cst_18 : f32 to vector<16x128xf32>
    %26 = arith.maximumf %24, %25 : vector<16x128xf32>
    %27 = arith.truncf %26 : vector<16x128xf32> to vector<16x128xbf16>
    %c0_19 = arith.constant 0 : index
    %c0_20 = arith.constant 0 : index
    %28 = vector.load %arg8[%c0_19, %c0_20] : memref<128x1024xbf16, #tpu.memory_space<vmem>>, vector<128x1024xbf16>
    %cst_21 = arith.constant dense<0.000000e+00> : vector<16x1024xf32>
    %29 = tpu.matmul %27, %28, %cst_21 {dimension_numbers = #tpu.dot_dimension_numbers<[1], [0], [0], [1], [0, 0, 1, 1], [], []>} : vector<16x128xbf16>, vector<128x1024xbf16>, vector<16x1024xf32> -> vector<16x1024xf32>
    %c0_22 = arith.constant 0 : index
    %c0_23 = arith.constant 0 : index
    %30 = vector.load %arg9[%c0_22, %c0_23] : memref<1x1024xf32, #tpu.memory_space<vmem>>, vector<1x1024xf32>
    %31 = vector.broadcast %30 : vector<1x1024xf32> to vector<16x1024xf32>
    %32 = arith.addf %29, %31 : vector<16x1024xf32>
    %33 = arith.truncf %32 : vector<16x1024xf32> to vector<16x1024xbf16>
    %c0_24 = arith.constant 0 : index
    %c0_25 = arith.constant 0 : index
    %34 = vector.load %arg14[%c0_24, %c0_25] : memref<16x1024xbf16, #tpu.memory_space<vmem>>, vector<16x1024xbf16>
    tpu.vector_store %arg14[%c0_24, %c0_25], %33 {strides = array<i32>} : memref<16x1024xbf16, #tpu.memory_space<vmem>>, vector<16x1024xbf16>,
    %c0_26 = arith.constant 0 : index
    %c0_27 = arith.constant 0 : index
    %35 = vector.load %arg10[%c0_26, %c0_27] : memref<128x640xbf16, #tpu.memory_space<vmem>>, vector<128x640xbf16>
    %cst_28 = arith.constant dense<0.000000e+00> : vector<16x640xf32>
    %36 = tpu.matmul %12, %35, %cst_28 {dimension_numbers = #tpu.dot_dimension_numbers<[1], [0], [0], [1], [0, 0, 1, 1], [], []>} : vector<16x128xbf16>, vector<128x640xbf16>, vector<16x640xf32> -> vector<16x640xf32>
    %c0_29 = arith.constant 0 : index
    %c0_30 = arith.constant 0 : index
    %37 = vector.load %arg11[%c0_29, %c0_30] : memref<1x640xf32, #tpu.memory_space<vmem>>, vector<1x640xf32>
    %38 = vector.broadcast %37 : vector<1x640xf32> to vector<16x640xf32>
    %39 = arith.addf %36, %38 : vector<16x640xf32>
    %c0_31 = arith.constant 0 : index
    %c0_32 = arith.constant 0 : index
    %40 = vector.load %arg12[%c0_31, %c0_32] : memref<128x640xbf16, #tpu.memory_space<vmem>>, vector<128x640xbf16>
    %cst_33 = arith.constant dense<0.000000e+00> : vector<16x640xf32>
    %41 = tpu.matmul %18, %40, %cst_33 {dimension_numbers = #tpu.dot_dimension_numbers<[1], [0], [0], [1], [0, 0, 1, 1], [], []>} : vector<16x128xbf16>, vector<128x640xbf16>, vector<16x640xf32> -> vector<16x640xf32>
    %42 = vector.extract_strided_slice %39 {offsets = [0, 0], sizes = [16, 128], strides = [1, 1]} : vector<16x640xf32> to vector<16x128xf32>
    %43 = vector.extract_strided_slice %41 {offsets = [0, 0], sizes = [16, 128], strides = [1, 1]} : vector<16x640xf32> to vector<16x128xf32>
    %44 = arith.mulf %42, %43 : vector<16x128xf32>
    %45 = vector.extract_strided_slice %39 {offsets = [0, 128], sizes = [16, 128], strides = [1, 1]} : vector<16x640xf32> to vector<16x128xf32>
    %46 = vector.extract_strided_slice %41 {offsets = [0, 128], sizes = [16, 128], strides = [1, 1]} : vector<16x640xf32> to vector<16x128xf32>
    %47 = arith.mulf %45, %46 : vector<16x128xf32>
    %48 = arith.addf %44, %47 : vector<16x128xf32>
    %49 = vector.extract_strided_slice %39 {offsets = [0, 256], sizes = [16, 128], strides = [1, 1]} : vector<16x640xf32> to vector<16x128xf32>
    %50 = vector.extract_strided_slice %41 {offsets = [0, 256], sizes = [16, 128], strides = [1, 1]} : vector<16x640xf32> to vector<16x128xf32>
    %51 = arith.mulf %49, %50 : vector<16x128xf32>
    %52 = arith.addf %48, %51 : vector<16x128xf32>
    %53 = vector.extract_strided_slice %39 {offsets = [0, 384], sizes = [16, 128], strides = [1, 1]} : vector<16x640xf32> to vector<16x128xf32>
    %54 = vector.extract_strided_slice %41 {offsets = [0, 384], sizes = [16, 128], strides = [1, 1]} : vector<16x640xf32> to vector<16x128xf32>
    %55 = arith.mulf %53, %54 : vector<16x128xf32>
    %56 = arith.addf %52, %55 : vector<16x128xf32>
    %57 = vector.extract_strided_slice %39 {offsets = [0, 512], sizes = [16, 128], strides = [1, 1]} : vector<16x640xf32> to vector<16x128xf32>
    %58 = vector.extract_strided_slice %41 {offsets = [0, 512], sizes = [16, 128], strides = [1, 1]} : vector<16x640xf32> to vector<16x128xf32>
    %59 = arith.mulf %57, %58 : vector<16x128xf32>
    %60 = arith.addf %56, %59 : vector<16x128xf32>
    %61 = tpu.iota {dimensions = array<i32: 1>} : vector<16x128xi32>
    %c10_i32 = arith.constant 10 : i32
    %62 = vector.broadcast %c10_i32 : i32 to vector<16x128xi32>
    %63 = arith.cmpi slt, %61, %62 : vector<16x128xi32>
    %cst_34 = arith.constant 0xFF800000 : f32
    %64 = vector.broadcast %cst_34 : f32 to vector<16x128xf32>
    %65 = arith.select %63, %60, %64 : vector<16x128xi1>, vector<16x128xf32>
    %cst_35 = arith.constant dense<0xFF800000> : vector<16xf32>
    %66 = vector.multi_reduction <maximumf>, %65, %cst_35 [1] : vector<16x128xf32> to vector<16xf32>
    %67 = vector.shape_cast %66 : vector<16xf32> to vector<16x1xf32>
    %68 = vector.broadcast %67 : vector<16x1xf32> to vector<16x128xf32>
    %69 = arith.subf %65, %68 : vector<16x128xf32>
    %70 = math.exp %69 : vector<16x128xf32>
    %cst_36 = arith.constant dense<0.000000e+00> : vector<16xf32>
    %71 = vector.multi_reduction <add>, %70, %cst_36 [1] : vector<16x128xf32> to vector<16xf32>
    %72 = vector.shape_cast %71 : vector<16xf32> to vector<16x1xf32>
    %73 = math.log %72 : vector<16x1xf32>
    %74 = vector.broadcast %67 : vector<16x1xf32> to vector<16x128xf32>
    %75 = arith.subf %60, %74 : vector<16x128xf32>
    %76 = vector.broadcast %73 : vector<16x1xf32> to vector<16x128xf32>
    %77 = arith.subf %75, %76 : vector<16x128xf32>
    %c0_37 = arith.constant 0 : index
    %c0_38 = arith.constant 0 : index
    %78 = vector.load %arg13[%c0_37, %c0_38] : memref<16x128xf32, #tpu.memory_space<vmem>>, vector<16x128xf32>
    tpu.vector_store %arg13[%c0_37, %c0_38], %77 {strides = array<i32>} : memref<16x128xf32, #tpu.memory_space<vmem>>, vector<16x128xf32>,
    return
  }
  func.func @transform_0(%arg0: i32) -> (i32, i32) {
    %c0_i32 = arith.constant 0 : i32
    %c0_i32_0 = arith.constant 0 : i32
    return %arg0, %c0_i32 : i32, i32
  }
  func.func @transform_1(%arg0: i32) -> (i32, i32) {
    %c0_i32 = arith.constant 0 : i32
    %c0_i32_0 = arith.constant 0 : i32
    %c0_i32_1 = arith.constant 0 : i32
    return %c0_i32, %c0_i32_0 : i32, i32
  }
  func.func @transform_2(%arg0: i32) -> (i32, i32) {
    %c0_i32 = arith.constant 0 : i32
    %c0_i32_0 = arith.constant 0 : i32
    %c0_i32_1 = arith.constant 0 : i32
    return %c0_i32, %c0_i32_0 : i32, i32
  }
  func.func @transform_3(%arg0: i32) -> (i32, i32) {
    %c0_i32 = arith.constant 0 : i32
    %c0_i32_0 = arith.constant 0 : i32
    %c0_i32_1 = arith.constant 0 : i32
    return %c0_i32, %c0_i32_0 : i32, i32
  }
  func.func @transform_4(%arg0: i32) -> (i32, i32) {
    %c0_i32 = arith.constant 0 : i32
    %c0_i32_0 = arith.constant 0 : i32
    %c0_i32_1 = arith.constant 0 : i32
    return %c0_i32, %c0_i32_0 : i32, i32
  }
  func.func @transform_5(%arg0: i32) -> (i32, i32) {
    %c0_i32 = arith.constant 0 : i32
    %c0_i32_0 = arith.constant 0 : i32
    %c0_i32_1 = arith.constant 0 : i32
    return %c0_i32, %c0_i32_0 : i32, i32
  }
  func.func @transform_6(%arg0: i32) -> (i32, i32) {
    %c0_i32 = arith.constant 0 : i32
    %c0_i32_0 = arith.constant 0 : i32
    %c0_i32_1 = arith.constant 0 : i32
    return %c0_i32, %c0_i32_0 : i32, i32
  }
  func.func @transform_7(%arg0: i32) -> (i32, i32) {
    %c0_i32 = arith.constant 0 : i32
    %c0_i32_0 = arith.constant 0 : i32
    %c0_i32_1 = arith.constant 0 : i32
    return %c0_i32, %c0_i32_0 : i32, i32
  }
  func.func @transform_8(%arg0: i32) -> (i32, i32) {
    %c0_i32 = arith.constant 0 : i32
    %c0_i32_0 = arith.constant 0 : i32
    %c0_i32_1 = arith.constant 0 : i32
    return %c0_i32, %c0_i32_0 : i32, i32
  }
  func.func @transform_9(%arg0: i32) -> (i32, i32) {
    %c0_i32 = arith.constant 0 : i32
    %c0_i32_0 = arith.constant 0 : i32
    %c0_i32_1 = arith.constant 0 : i32
    return %c0_i32, %c0_i32_0 : i32, i32
  }
  func.func @transform_10(%arg0: i32) -> (i32, i32) {
    %c0_i32 = arith.constant 0 : i32
    %c0_i32_0 = arith.constant 0 : i32
    %c0_i32_1 = arith.constant 0 : i32
    return %c0_i32, %c0_i32_0 : i32, i32
  }
  func.func @transform_11(%arg0: i32) -> (i32, i32) {
    %c0_i32 = arith.constant 0 : i32
    %c0_i32_0 = arith.constant 0 : i32
    %c0_i32_1 = arith.constant 0 : i32
    return %c0_i32, %c0_i32_0 : i32, i32
  }
  func.func @transform_12(%arg0: i32) -> (i32, i32) {
    %c0_i32 = arith.constant 0 : i32
    %c0_i32_0 = arith.constant 0 : i32
    return %arg0, %c0_i32 : i32, i32
  }
  func.func @transform_13(%arg0: i32) -> (i32, i32) {
    %c0_i32 = arith.constant 0 : i32
    %c0_i32_0 = arith.constant 0 : i32
    return %arg0, %c0_i32 : i32, i32
  }
  func.func @transform_14(%arg0: i32) -> (i32, i32) {
    %c0_i32 = arith.constant 0 : i32
    %c0_i32_0 = arith.constant 0 : i32
    return %arg0, %c0_i32 : i32, i32
  }
}

</mosaic_0001>

<llo_original>
// kernel: gsenn_forward.1
$region0: #{gsenn_forward.1}
  #allocation0 [shape = 'u32[]', space=smem, size = 0x4, offset = 0x4, fixed_abs, tag = 'smem constant byte address 0x4 - core index']
  #allocation1 [shape = 'u32[144,128]{1,0:T(1,128)}', space=vmem, size = 0x12000, scoped, tag = 'internal scratch']
  %s0 = inlined_call_operand.vmem [shape: f32[16,1024], index: 0, kind: input, shape index: {}]
  %s1 = inlined_call_operand.hbm [shape: bf16[1024,256], index: 1, kind: input, shape index: {}]
  %s2 = inlined_call_operand.hbm [shape: f32[1,256], index: 2, kind: input, shape index: {}]
  %s3 = inlined_call_operand.hbm [shape: bf16[128,128], index: 3, kind: input, shape index: {}]
  %s4 = inlined_call_operand.vmem [shape: f32[1,128], index: 4, kind: input, shape index: {}]
  %s5 = inlined_call_operand.hbm [shape: bf16[128,128], index: 5, kind: input, shape index: {}]
  %s6 = inlined_call_operand.hbm [shape: f32[1,128], index: 6, kind: input, shape index: {}]
  %s7 = inlined_call_operand.hbm [shape: bf16[128,1024], index: 7, kind: input, shape index: {}]
  %s8 = inlined_call_operand.hbm [shape: f32[1,1024], index: 8, kind: input, shape index: {}]
  %s9 = inlined_call_operand.vmem [shape: bf16[128,640], index: 9, kind: input, shape index: {}]
  %s10 = inlined_call_operand.vmem [shape: f32[1,640], index: 10, kind: input, shape index: {}]
  %s11 = inlined_call_operand.hbm [shape: bf16[128,640], index: 11, kind: input, shape index: {}]
  %s12 = inlined_call_operand.vmem [shape: f32[16,128], index: 12, kind: output, shape index: {0}]
  %s13 = inlined_call_operand.vmem [shape: bf16[16,1024], index: 13, kind: output, shape index: {1}]
  %s14 = inlined_call_operand.vmem [shape: bf16[16,128], index: 14, kind: output, shape index: {2}]
  %15 = xla_tuple %s12, %s13, %s14
  %s16 = sld [smem:[#allocation0]]
  $region106: #{gsenn_forward.1} parent=0
    _
  %s18 = ssub.s32 1, %s16
  %s19 = scalar_select 0, %s18, %s16
  $region1: #{gsenn_forward.1} parent=0
    #allocation2 [shape = 'u8[524288]{0}', space=vmem, size = 0x80000, scoped, tag = 'input window, operand 1, single buffered']
    #allocation3 [shape = 's32[1]{0}', space=sflag, size = 0x4, scoped, tag = 'scoped memory for gsenn_forward.1']
    #allocation4 [shape = 'u8[1024]{0}', space=vmem, size = 0x400, scoped, tag = 'input window, operand 2, single buffered']
    #allocation5 [shape = 's32[1]{0}', space=sflag, size = 0x4, scoped, tag = 'scoped memory for gsenn_forward.1']
    #allocation6 [shape = 'u8[32768]{0}', space=vmem, size = 0x8000, scoped, tag = 'input window, operand 3, single buffered']
    #allocation7 [shape = 'u8[32768]{0}', space=vmem, size = 0x8000, scoped, tag = 'input window, operand 5, single buffered']
    #allocation8 [shape = 's32[1]{0}', space=sflag, size = 0x4, scoped, tag = 'scoped memory for gsenn_forward.1']
    #allocation9 [shape = 'u8[512]{0}', space=vmem, size = 0x400, scoped, tag = 'input window, operand 6, single buffered']
    #allocation10 [shape = 'u8[262144]{0}', space=vmem, size = 0x40000, scoped, tag = 'input window, operand 7, single buffered']
    #allocation11 [shape = 's32[1]{0}', space=sflag, size = 0x4, scoped, tag = 'scoped memory for gsenn_forward.1']
    #allocation12 [shape = 'u8[4096]{0}', space=vmem, size = 0x1000, scoped, tag = 'input window, operand 8, single buffered']
    #allocation13 [shape = 'u8[163840]{0}', space=vmem, size = 0x28000, scoped, tag = 'input window, operand 11, single buffered']
    #allocation14 [shape = 's32[1]{0}', space=sflag, size = 0x4, scoped, tag = 'scoped memory for gsenn_forward.1']
    %20 = vsyncpa [#allocation3], 0
    %21 = vsyncpa [#allocation5], 0
    %22 = vsyncpa [#allocation8], 0
    %23 = vsyncpa [#allocation11], 0
    %24 = vsyncpa [#allocation14], 0
    // Predicated region
    $region2: #{gsenn_forward.1} parent=1 // pred_check
      _
    $region3: #{gsenn_forward.1} parent=1 // pred_check_branch
      %26 = sbr.rel (0) target = $region5
    $region4: #{gsenn_forward.1} parent=1 // pred_region
      _
    $region5: #{gsenn_forward.1} parent=1 // pred_fallthru
      _
    // Predicated region
    $region6: #{gsenn_forward.1} parent=1 // pred_check
      _
    $region7: #{gsenn_forward.1} parent=1 // pred_check_branch
      %28 = sbr.rel (0) target = $region9
    $region8: #{gsenn_forward.1} parent=1 // pred_region
      %s30 = ssub.s32 16384, 16384
      %31 = vsyncadd [#allocation3], %s30
      %s32 = sshll.u32 [#allocation2], 4
      %s33 = int_to_ptr.vmem [resolvable:$true] %s32
      %38 = dma.hbm_to_vmem [thread:$0]  %s1, 16384, %s33, [#allocation3], 128, 128, 8
    $region9: #{gsenn_forward.1} parent=1 // pred_fallthru
      _
    // Predicated region
    $region10: #{gsenn_forward.1} parent=1 // pred_check
      _
    $region11: #{gsenn_forward.1} parent=1 // pred_check_branch
      %40 = sbr.rel (0) target = $region13
    $region12: #{gsenn_forward.1} parent=1 // pred_region
      %s42 = ssub.s32 32, 32
      %43 = vsyncadd [#allocation5], %s42
      %s45 = sshll.u32 [#allocation4], 4
      %s46 = int_to_ptr.vmem [resolvable:$true] %s45
      %48 = dma.hbm_to_vmem [thread:$0]  %s2, 32, %s46, [#allocation5]
    $region13: #{gsenn_forward.1} parent=1 // pred_fallthru
      _
    // Predicated region
    $region14: #{gsenn_forward.1} parent=1 // pred_check
      _
    $region15: #{gsenn_forward.1} parent=1 // pred_check_branch
      %50 = sbr.rel (0) target = $region17
    $region16: #{gsenn_forward.1} parent=1 // pred_region
      %s52 = ssub.s32 1024, 1024
      %53 = vsyncadd [#allocation5], %s52
      %s54 = sshll.u32 [#allocation6], 4
      %s55 = int_to_ptr.vmem [resolvable:$true] %s54
      %60 = dma.hbm_to_vmem [thread:$0]  %s3, 1024, %s55, [#allocation5], 64, 64, 4
    $region17: #{gsenn_forward.1} parent=1 // pred_fallthru
      _
    // Predicated region
    $region18: #{gsenn_forward.1} parent=1 // pred_check
      _
    $region19: #{gsenn_forward.1} parent=1 // pred_check_branch
      %62 = sbr.rel (0) target = $region21
    $region20: #{gsenn_forward.1} parent=1 // pred_region
      _
    $region21: #{gsenn_forward.1} parent=1 // pred_fallthru
      _
    // Predicated region
    $region22: #{gsenn_forward.1} parent=1 // pred_check
      _
    $region23: #{gsenn_forward.1} parent=1 // pred_check_branch
      %64 = sbr.rel (0) target = $region25
    $region24: #{gsenn_forward.1} parent=1 // pred_region
      %s66 = ssub.s32 1024, 1024
      %67 = vsyncadd [#allocation8], %s66
      %s68 = sshll.u32 [#allocation7], 4
      %s69 = int_to_ptr.vmem [resolvable:$true] %s68
      %74 = dma.hbm_to_vmem [thread:$0]  %s5, 1024, %s69, [#allocation8], 64, 64, 4
    $region25: #{gsenn_forward.1} parent=1 // pred_fallthru
      _
    // Predicated region
    $region26: #{gsenn_forward.1} parent=1 // pred_check
      _
    $region27: #{gsenn_forward.1} parent=1 // pred_check_branch
      %76 = sbr.rel (0) target = $region29
    $region28: #{gsenn_forward.1} parent=1 // pred_region
      %s78 = ssub.s32 16, 16
      %79 = vsyncadd [#allocation8], %s78
      %s81 = sshll.u32 [#allocation9], 4
      %s82 = int_to_ptr.vmem [resolvable:$true] %s81
      %84 = dma.hbm_to_vmem [thread:$0]  %s6, 16, %s82, [#allocation8]
    $region29: #{gsenn_forward.1} parent=1 // pred_fallthru
      _
    // Predicated region
    $region30: #{gsenn_forward.1} parent=1 // pred_check
      _
    $region31: #{gsenn_forward.1} parent=1 // pred_check_branch
      %86 = sbr.rel (0) target = $region33
    $region32: #{gsenn_forward.1} parent=1 // pred_region
      %s88 = ssub.s32 8192, 8192
      %89 = vsyncadd [#allocation11], %s88
      %s90 = sshll.u32 [#allocation10], 4
      %s91 = int_to_ptr.vmem [resolvable:$true] %s90
      %96 = dma.hbm_to_vmem [thread:$0]  %s7, 8192, %s91, [#allocation11], 512, 512, 32
    $region33: #{gsenn_forward.1} parent=1 // pred_fallthru
      _
    // Predicated region
    $region34: #{gsenn_forward.1} parent=1 // pred_check
      _
    $region35: #{gsenn_forward.1} parent=1 // pred_check_branch
      %98 = sbr.rel (0) target = $region37
    $region36: #{gsenn_forward.1} parent=1 // pred_region
      %s100 = ssub.s32 128, 128
      %101 = vsyncadd [#allocation11], %s100
      %s103 = sshll.u32 [#allocation12], 4
      %s104 = int_to_ptr.vmem [resolvable:$true] %s103
      %106 = dma.hbm_to_vmem [thread:$0]  %s8, 128, %s104, [#allocation11]
    $region37: #{gsenn_forward.1} parent=1 // pred_fallthru
      _
    // Predicated region
    $region38: #{gsenn_forward.1} parent=1 // pred_check
      _
    $region39: #{gsenn_forward.1} parent=1 // pred_check_branch
      %108 = sbr.rel (0) target = $region41
    $region40: #{gsenn_forward.1} parent=1 // pred_region
      _
    $region41: #{gsenn_forward.1} parent=1 // pred_fallthru
      _
    // Predicated region
    $region42: #{gsenn_forward.1} parent=1 // pred_check
      _
    $region43: #{gsenn_forward.1} parent=1 // pred_check_branch
      %110 = sbr.rel (0) target = $region45
    $region44: #{gsenn_forward.1} parent=1 // pred_region
      _
    $region45: #{gsenn_forward.1} parent=1 // pred_fallthru
      _
    // Predicated region
    $region46: #{gsenn_forward.1} parent=1 // pred_check
      _
    $region47: #{gsenn_forward.1} parent=1 // pred_check_branch
      %112 = sbr.rel (0) target = $region49
    $region48: #{gsenn_forward.1} parent=1 // pred_region
      %s114 = ssub.s32 5120, 5120
      %115 = vsyncadd [#allocation14], %s114
      %s116 = sshll.u32 [#allocation13], 4
      %s117 = int_to_ptr.vmem [resolvable:$true] %s116
      %122 = dma.hbm_to_vmem [thread:$0]  %s11, 5120, %s117, [#allocation14], 320, 320, 20
    $region49: #{gsenn_forward.1} parent=1 // pred_fallthru
      _
    // Predicated region
    $region50: #{gsenn_forward.1} parent=1 // pred_check
      _
    $region51: #{gsenn_forward.1} parent=1 // pred_check_branch
      %124 = sbr.rel (0) target = $region53
    $region52: #{gsenn_forward.1} parent=1 // pred_region
      %125 = dma.done [#allocation3], 16384
    $region53: #{gsenn_forward.1} parent=1 // pred_fallthru
      _
    // Predicated region
    $region54: #{gsenn_forward.1} parent=1 // pred_check
      _
    $region55: #{gsenn_forward.1} parent=1 // pred_check_branch
      %127 = sbr.rel (0) target = $region57
    $region56: #{gsenn_forward.1} parent=1 // pred_region
      %128 = dma.done [#allocation5], 32
    $region57: #{gsenn_forward.1} parent=1 // pred_fallthru
      _
    // Predicated region
    $region58: #{gsenn_forward.1} parent=1 // pred_check
      _
    $region59: #{gsenn_forward.1} parent=1 // pred_check_branch
      %130 = sbr.rel (0) target = $region61
    $region60: #{gsenn_forward.1} parent=1 // pred_region
      %131 = dma.done [#allocation5], 1024
    $region61: #{gsenn_forward.1} parent=1 // pred_fallthru
      _
    // Predicated region
    $region62: #{gsenn_forward.1} parent=1 // pred_check
      _
    $region63: #{gsenn_forward.1} parent=1 // pred_check_branch
      %133 = sbr.rel (0) target = $region65
    $region64: #{gsenn_forward.1} parent=1 // pred_region
      %134 = dma.done [#allocation8], 1024
    $region65: #{gsenn_forward.1} parent=1 // pred_fallthru
      _
    // Predicated region
    $region66: #{gsenn_forward.1} parent=1 // pred_check
      _
    $region67: #{gsenn_forward.1} parent=1 // pred_check_branch
      %136 = sbr.rel (0) target = $region69
    $region68: #{gsenn_forward.1} parent=1 // pred_region
      %137 = dma.done [#allocation8], 16
    $region69: #{gsenn_forward.1} parent=1 // pred_fallthru
      _
    // Predicated region
    $region70: #{gsenn_forward.1} parent=1 // pred_check
      _
    $region71: #{gsenn_forward.1} parent=1 // pred_check_branch
      %139 = sbr.rel (0) target = $region73
    $region72: #{gsenn_forward.1} parent=1 // pred_region
      %140 = dma.done [#allocation11], 8192
    $region73: #{gsenn_forward.1} parent=1 // pred_fallthru
      _
    // Predicated region
    $region74: #{gsenn_forward.1} parent=1 // pred_check
      _
    $region75: #{gsenn_forward.1} parent=1 // pred_check_branch
      %142 = sbr.rel (0) target = $region77
    $region76: #{gsenn_forward.1} parent=1 // pred_region
      %143 = dma.done [#allocation11], 128
    $region77: #{gsenn_forward.1} parent=1 // pred_fallthru
      _
    // Predicated region
    $region78: #{gsenn_forward.1} parent=1 // pred_check
      _
    $region79: #{gsenn_forward.1} parent=1 // pred_check_branch
      %145 = sbr.rel (0) target = $region81
    $region80: #{gsenn_forward.1} parent=1 // pred_region
      %146 = dma.done [#allocation14], 5120
    $region81: #{gsenn_forward.1} parent=1 // pred_fallthru
      _
    %v148 = vld [vmem:[%s0] sm:$0xff]
    %v149 = vld [vmem:[%s0 + $0x8] sm:$0xff]
    %v150 = vld [vmem:[%s0 + $0x10] sm:$0xff]
    %v151 = vld [vmem:[%s0 + $0x18] sm:$0xff]
    %v152 = vld [vmem:[%s0 + $0x20] sm:$0xff]
    %v153 = vld [vmem:[%s0 + $0x28] sm:$0xff]
    %v154 = vld [vmem:[%s0 + $0x30] sm:$0xff]
    %v155 = vld [vmem:[%s0 + $0x38] sm:$0xff]
    %v156 = vld [vmem:[%s0 + $0x40] sm:$0xff]
    %v157 = vld [vmem:[%s0 + $0x48] sm:$0xff]
    %v158 = vld [vmem:[%s0 + $0x50] sm:$0xff]
    %v159 = vld [vmem:[%s0 + $0x58] sm:$0xff]
    %v160 = vld [vmem:[%s0 + $0x60] sm:$0xff]
    %v161 = vld [vmem:[%s0 + $0x68] sm:$0xff]
    %v162 = vld [vmem:[%s0 + $0x70] sm:$0xff]
    %v163 = vld [vmem:[%s0 + $0x78] sm:$0xff]
    %v164 = vpack.c.bf16 %v156, %v148
    %v165 = vpack.c.bf16 %v157, %v149
    %v166 = vpack.c.bf16 %v158, %v150
    %v167 = vpack.c.bf16 %v159, %v151
    %v168 = vpack.c.bf16 %v160, %v152
    %v169 = vpack.c.bf16 %v161, %v153
    %v170 = vpack.c.bf16 %v162, %v154
    %v171 = vpack.c.bf16 %v163, %v155
    %v172 = vld [vmem:[#allocation2] sm:$0xff]
    %v173 = vld [vmem:[#allocation2 + $0x8] sm:$0xff]
    %v174 = vld [vmem:[#allocation2 + $0x10] sm:$0xff]
    %v175 = vld [vmem:[#allocation2 + $0x18] sm:$0xff]
    %v176 = vld [vmem:[#allocation2 + $0x20] sm:$0xff]
    %v177 = vld [vmem:[#allocation2 + $0x28] sm:$0xff]
    %v178 = vld [vmem:[#allocation2 + $0x30] sm:$0xff]
    %v179 = vld [vmem:[#allocation2 + $0x38] sm:$0xff]
    %v180 = vld [vmem:[#allocation2 + $0x40] sm:$0xff]
    %v181 = vld [vmem:[#allocation2 + $0x48] sm:$0xff]
    %v182 = vld [vmem:[#allocation2 + $0x50] sm:$0xff]
    %v183 = vld [vmem:[#allocation2 + $0x58] sm:$0xff]
    %v184 = vld [vmem:[#allocation2 + $0x60] sm:$0xff]
    %v185 = vld [vmem:[#allocation2 + $0x68] sm:$0xff]
    %v186 = vld [vmem:[#allocation2 + $0x70] sm:$0xff]
    %v187 = vld [vmem:[#allocation2 + $0x78] sm:$0xff]
    %v188 = vld [vmem:[#allocation2 + $0x80] sm:$0xff]
    %v189 = vld [vmem:[#allocation2 + $0x88] sm:$0xff]
    %v190 = vld [vmem:[#allocation2 + $0x90] sm:$0xff]
    %v191 = vld [vmem:[#allocation2 + $0x98] sm:$0xff]
    %v192 = vld [vmem:[#allocation2 + $0xa0] sm:$0xff]
    %v193 = vld [vmem:[#allocation2 + $0xa8] sm:$0xff]
    %v194 = vld [vmem:[#allocation2 + $0xb0] sm:$0xff]
    %v195 = vld [vmem:[#allocation2 + $0xb8] sm:$0xff]
    %v196 = vld [vmem:[#allocation2 + $0xc0] sm:$0xff]
    %v197 = vld [vmem:[#allocation2 + $0xc8] sm:$0xff]
    %v198 = vld [vmem:[#allocation2 + $0xd0] sm:$0xff]
    %v199 = vld [vmem:[#allocation2 + $0xd8] sm:$0xff]
    %v200 = vld [vmem:[#allocation2 + $0xe0] sm:$0xff]
    %v201 = vld [vmem:[#allocation2 + $0xe8] sm:$0xff]
    %v202 = vld [vmem:[#allocation2 + $0xf0] sm:$0xff]
    %v203 = vld [vmem:[#allocation2 + $0xf8] sm:$0xff]
    %v204 = vld [vmem:[#allocation2 + $0x100] sm:$0xff]
    %v205 = vld [vmem:[#allocation2 + $0x108] sm:$0xff]
    %v206 = vld [vmem:[#allocation2 + $0x110] sm:$0xff]
    %v207 = vld [vmem:[#allocation2 + $0x118] sm:$0xff]
    %v208 = vld [vmem:[#allocation2 + $0x120] sm:$0xff]
    %v209 = vld [vmem:[#allocation2 + $0x128] sm:$0xff]
    %v210 = vld [vmem:[#allocation2 + $0x130] sm:$0xff]
    %v211 = vld [vmem:[#allocation2 + $0x138] sm:$0xff]
    %v212 = vld [vmem:[#allocation2 + $0x140] sm:$0xff]
    %v213 = vld [vmem:[#allocation2 + $0x148] sm:$0xff]
    %v214 = vld [vmem:[#allocation2 + $0x150] sm:$0xff]
    %v215 = vld [vmem:[#allocation2 + $0x158] sm:$0xff]
    %v216 = vld [vmem:[#allocation2 + $0x160] sm:$0xff]
    %v217 = vld [vmem:[#allocation2 + $0x168] sm:$0xff]
    %v218 = vld [vmem:[#allocation2 + $0x170] sm:$0xff]
    %v219 = vld [vmem:[#allocation2 + $0x178] sm:$0xff]
    %v220 = vld [vmem:[#allocation2 + $0x180] sm:$0xff]
    %v221 = vld [vmem:[#allocation2 + $0x188] sm:$0xff]
    %v222 = vld [vmem:[#allocation2 + $0x190] sm:$0xff]
    %v223 = vld [vmem:[#allocation2 + $0x198] sm:$0xff]
    %v224 = vld [vmem:[#allocation2 + $0x1a0] sm:$0xff]
    %v225 = vld [vmem:[#allocation2 + $0x1a8] sm:$0xff]
    %v226 = vld [vmem:[#allocation2 + $0x1b0] sm:$0xff]
    %v227 = vld [vmem:[#allocation2 + $0x1b8] sm:$0xff]
    %v228 = vld [vmem:[#allocation2 + $0x1c0] sm:$0xff]
    %v229 = vld [vmem:[#allocation2 + $0x1c8] sm:$0xff]
    %v230 = vld [vmem:[#allocation2 + $0x1d0] sm:$0xff]
    %v231 = vld [vmem:[#allocation2 + $0x1d8] sm:$0xff]
    %v232 = vld [vmem:[#allocation2 + $0x1e0] sm:$0xff]
    %v233 = vld [vmem:[#allocation2 + $0x1e8] sm:$0xff]
    %v234 = vld [vmem:[#allocation2 + $0x1f0] sm:$0xff]
    %v235 = vld [vmem:[#allocation2 + $0x1f8] sm:$0xff]
    %v236 = vld [vmem:[#allocation2 + $0x200] sm:$0xff]
    %v237 = vld [vmem:[#allocation2 + $0x208] sm:$0xff]
    %v238 = vld [vmem:[#allocation2 + $0x210] sm:$0xff]
    %v239 = vld [vmem:[#allocation2 + $0x218] sm:$0xff]
    %v240 = vld [vmem:[#allocation2 + $0x220] sm:$0xff]
    %v241 = vld [vmem:[#allocation2 + $0x228] sm:$0xff]
    %v242 = vld [vmem:[#allocation2 + $0x230] sm:$0xff]
    %v243 = vld [vmem:[#allocation2 + $0x238] sm:$0xff]
    %v244 = vld [vmem:[#allocation2 + $0x240] sm:$0xff]
    %v245 = vld [vmem:[#allocation2 + $0x248] sm:$0xff]
    %v246 = vld [vmem:[#allocation2 + $0x250] sm:$0xff]
    %v247 = vld [vmem:[#allocation2 + $0x258] sm:$0xff]
    %v248 = vld [vmem:[#allocation2 + $0x260] sm:$0xff]
    %v249 = vld [vmem:[#allocation2 + $0x268] sm:$0xff]
    %v250 = vld [vmem:[#allocation2 + $0x270] sm:$0xff]
    %v251 = vld [vmem:[#allocation2 + $0x278] sm:$0xff]
    %v252 = vld [vmem:[#allocation2 + $0x280] sm:$0xff]
    %v253 = vld [vmem:[#allocation2 + $0x288] sm:$0xff]
    %v254 = vld [vmem:[#allocation2 + $0x290] sm:$0xff]
    %v255 = vld [vmem:[#allocation2 + $0x298] sm:$0xff]
    %v256 = vld [vmem:[#allocation2 + $0x2a0] sm:$0xff]
    %v257 = vld [vmem:[#allocation2 + $0x2a8] sm:$0xff]
    %v258 = vld [vmem:[#allocation2 + $0x2b0] sm:$0xff]
    %v259 = vld [vmem:[#allocation2 + $0x2b8] sm:$0xff]
    %v260 = vld [vmem:[#allocation2 + $0x2c0] sm:$0xff]
    %v261 = vld [vmem:[#allocation2 + $0x2c8] sm:$0xff]
    %v262 = vld [vmem:[#allocation2 + $0x2d0] sm:$0xff]
    %v263 = vld [vmem:[#allocation2 + $0x2d8] sm:$0xff]
    %v264 = vld [vmem:[#allocation2 + $0x2e0] sm:$0xff]
    %v265 = vld [vmem:[#allocation2 + $0x2e8] sm:$0xff]
    %v266 = vld [vmem:[#allocation2 + $0x2f0] sm:$0xff]
    %v267 = vld [vmem:[#allocation2 + $0x2f8] sm:$0xff]
    %v268 = vld [vmem:[#allocation2 + $0x300] sm:$0xff]
    %v269 = vld [vmem:[#allocation2 + $0x308] sm:$0xff]
    %v270 = vld [vmem:[#allocation2 + $0x310] sm:$0xff]
    %v271 = vld [vmem:[#allocation2 + $0x318] sm:$0xff]
    %v272 = vld [vmem:[#allocation2 + $0x320] sm:$0xff]
    %v273 = vld [vmem:[#allocation2 + $0x328] sm:$0xff]
    %v274 = vld [vmem:[#allocation2 + $0x330] sm:$0xff]
    %v275 = vld [vmem:[#allocation2 + $0x338] sm:$0xff]
    %v276 = vld [vmem:[#allocation2 + $0x340] sm:$0xff]
    %v277 = vld [vmem:[#allocation2 + $0x348] sm:$0xff]
    %v278 = vld [vmem:[#allocation2 + $0x350] sm:$0xff]
    %v279 = vld [vmem:[#allocation2 + $0x358] sm:$0xff]
    %v280 = vld [vmem:[#allocation2 + $0x360] sm:$0xff]
    %v281 = vld [vmem:[#allocation2 + $0x368] sm:$0xff]
    %v282 = vld [vmem:[#allocation2 + $0x370] sm:$0xff]
    %v283 = vld [vmem:[#allocation2 + $0x378] sm:$0xff]
    %v284 = vld [vmem:[#allocation2 + $0x380] sm:$0xff]
    %v285 = vld [vmem:[#allocation2 + $0x388] sm:$0xff]
    %v286 = vld [vmem:[#allocation2 + $0x390] sm:$0xff]
    %v287 = vld [vmem:[#allocation2 + $0x398] sm:$0xff]
    %v288 = vld [vmem:[#allocation2 + $0x3a0] sm:$0xff]
    %v289 = vld [vmem:[#allocation2 + $0x3a8] sm:$0xff]
    %v290 = vld [vmem:[#allocation2 + $0x3b0] sm:$0xff]
    %v291 = vld [vmem:[#allocation2 + $0x3b8] sm:$0xff]
    %v292 = vld [vmem:[#allocation2 + $0x3c0] sm:$0xff]
    %v293 = vld [vmem:[#allocation2 + $0x3c8] sm:$0xff]
    %v294 = vld [vmem:[#allocation2 + $0x3d0] sm:$0xff]
    %v295 = vld [vmem:[#allocation2 + $0x3d8] sm:$0xff]
    %v296 = vld [vmem:[#allocation2 + $0x3e0] sm:$0xff]
    %v297 = vld [vmem:[#allocation2 + $0x3e8] sm:$0xff]
    %v298 = vld [vmem:[#allocation2 + $0x3f0] sm:$0xff]
    %v299 = vld [vmem:[#allocation2 + $0x3f8] sm:$0xff]
    %v300 = vld [vmem:[#allocation4] sm:$0x3]
    %v302 = vlaneseq
    %v303 = vshrl.u32 %v302, 7
    %v304 = vsub.s32 0, %v303
    %v305 = vrot.slane %v300, %v304
    %v306 = vlaneseq
    %v307 = vshrl.u32 %v306, 7
    %v308 = vsub.s32 1, %v307
    %v309 = vrot.slane %v300, %v308
    %v440 = vunpack.c.l.b16 %v172
    %v441 = vunpack.c.h.b16 %v172
    %v442 = vunpack.c.l.b16 %v173
    %v443 = vunpack.c.h.b16 %v173
    %v444 = vunpack.c.l.b16 %v174
    %v445 = vunpack.c.h.b16 %v174
    %v446 = vunpack.c.l.b16 %v175
    %v447 = vunpack.c.h.b16 %v175
    %v448 = vunpack.c.l.b16 %v176
    %v449 = vunpack.c.h.b16 %v176
    %v450 = vunpack.c.l.b16 %v177
    %v451 = vunpack.c.h.b16 %v177
    %v452 = vunpack.c.l.b16 %v178
    %v453 = vunpack.c.h.b16 %v178
    %v454 = vunpack.c.l.b16 %v179
    %v455 = vunpack.c.h.b16 %v179
    %v456 = vunpack.c.l.b16 %v180
    %v457 = vunpack.c.h.b16 %v180
    %v458 = vunpack.c.l.b16 %v181
    %v459 = vunpack.c.h.b16 %v181
    %v460 = vunpack.c.l.b16 %v182
    %v461 = vunpack.c.h.b16 %v182
    %v462 = vunpack.c.l.b16 %v183
    %v463 = vunpack.c.h.b16 %v183
    %v464 = vunpack.c.l.b16 %v184
    %v465 = vunpack.c.h.b16 %v184
    %v466 = vunpack.c.l.b16 %v185
    %v467 = vunpack.c.h.b16 %v185
    %v468 = vunpack.c.l.b16 %v186
    %v469 = vunpack.c.h.b16 %v186
    %v470 = vunpack.c.l.b16 %v187
    %v471 = vunpack.c.h.b16 %v187
    %v472 = vunpack.c.l.b16 %v188
    %v473 = vunpack.c.h.b16 %v188
    %v474 = vunpack.c.l.b16 %v189
    %v475 = vunpack.c.h.b16 %v189
    %v476 = vunpack.c.l.b16 %v190
    %v477 = vunpack.c.h.b16 %v190
    %v478 = vunpack.c.l.b16 %v191
    %v479 = vunpack.c.h.b16 %v191
    %v480 = vunpack.c.l.b16 %v192
    %v481 = vunpack.c.h.b16 %v192
    %v482 = vunpack.c.l.b16 %v193
    %v483 = vunpack.c.h.b16 %v193
    %v484 = vunpack.c.l.b16 %v194
    %v485 = vunpack.c.h.b16 %v194
    %v486 = vunpack.c.l.b16 %v195
    %v487 = vunpack.c.h.b16 %v195
    %v488 = vunpack.c.l.b16 %v196
    %v489 = vunpack.c.h.b16 %v196
    %v490 = vunpack.c.l.b16 %v197
    %v491 = vunpack.c.h.b16 %v197
    %v492 = vunpack.c.l.b16 %v198
    %v493 = vunpack.c.h.b16 %v198
    %v494 = vunpack.c.l.b16 %v199
    %v495 = vunpack.c.h.b16 %v199
    %v496 = vunpack.c.l.b16 %v200
    %v497 = vunpack.c.h.b16 %v200
    %v498 = vunpack.c.l.b16 %v201
    %v499 = vunpack.c.h.b16 %v201
    %v500 = vunpack.c.l.b16 %v202
    %v501 = vunpack.c.h.b16 %v202
    %v502 = vunpack.c.l.b16 %v203
    %v503 = vunpack.c.h.b16 %v203
    %v504 = vunpack.c.l.b16 %v204
    %v505 = vunpack.c.h.b16 %v204
    %v506 = vunpack.c.l.b16 %v205
    %v507 = vunpack.c.h.b16 %v205
    %v508 = vunpack.c.l.b16 %v206
    %v509 = vunpack.c.h.b16 %v206
    %v510 = vunpack.c.l.b16 %v207
    %v511 = vunpack.c.h.b16 %v207
    %v512 = vunpack.c.l.b16 %v208
    %v513 = vunpack.c.h.b16 %v208
    %v514 = vunpack.c.l.b16 %v209
    %v515 = vunpack.c.h.b16 %v209
    %v516 = vunpack.c.l.b16 %v210
    %v517 = vunpack.c.h.b16 %v210
    %v518 = vunpack.c.l.b16 %v211
    %v519 = vunpack.c.h.b16 %v211
    %v520 = vunpack.c.l.b16 %v212
    %v521 = vunpack.c.h.b16 %v212
    %v522 = vunpack.c.l.b16 %v213
    %v523 = vunpack.c.h.b16 %v213
    %v524 = vunpack.c.l.b16 %v214
    %v525 = vunpack.c.h.b16 %v214
    %v526 = vunpack.c.l.b16 %v215
    %v527 = vunpack.c.h.b16 %v215
    %v528 = vunpack.c.l.b16 %v216
    %v529 = vunpack.c.h.b16 %v216
    %v530 = vunpack.c.l.b16 %v217
    %v531 = vunpack.c.h.b16 %v217
    %v532 = vunpack.c.l.b16 %v218
    %v533 = vunpack.c.h.b16 %v218
    %v534 = vunpack.c.l.b16 %v219
    %v535 = vunpack.c.h.b16 %v219
    %v536 = vunpack.c.l.b16 %v220
    %v537 = vunpack.c.h.b16 %v220
    %v538 = vunpack.c.l.b16 %v221
    %v539 = vunpack.c.h.b16 %v221
    %v540 = vunpack.c.l.b16 %v222
    %v541 = vunpack.c.h.b16 %v222
    %v542 = vunpack.c.l.b16 %v223
    %v543 = vunpack.c.h.b16 %v223
    %v544 = vunpack.c.l.b16 %v224
    %v545 = vunpack.c.h.b16 %v224
    %v546 = vunpack.c.l.b16 %v225
    %v547 = vunpack.c.h.b16 %v225
    %v548 = vunpack.c.l.b16 %v226
    %v549 = vunpack.c.h.b16 %v226
    %v550 = vunpack.c.l.b16 %v227
    %v551 = vunpack.c.h.b16 %v227
    %v552 = vunpack.c.l.b16 %v228
    %v553 = vunpack.c.h.b16 %v228
    %v554 = vunpack.c.l.b16 %v229
    %v555 = vunpack.c.h.b16 %v229
    %v556 = vunpack.c.l.b16 %v230
    %v557 = vunpack.c.h.b16 %v230
    %v558 = vunpack.c.l.b16 %v231
    %v559 = vunpack.c.h.b16 %v231
    %v560 = vunpack.c.l.b16 %v232
    %v561 = vunpack.c.h.b16 %v232
    %v562 = vunpack.c.l.b16 %v233
    %v563 = vunpack.c.h.b16 %v233
    %v564 = vunpack.c.l.b16 %v234
    %v565 = vunpack.c.h.b16 %v234
    %v566 = vunpack.c.l.b16 %v235
    %v567 = vunpack.c.h.b16 %v235
    %v568 = vunpack.c.l.b16 %v236
    %v569 = vunpack.c.h.b16 %v236
    %v570 = vunpack.c.l.b16 %v237
    %v571 = vunpack.c.h.b16 %v237
    %v572 = vunpack.c.l.b16 %v238
    %v573 = vunpack.c.h.b16 %v238
    %v574 = vunpack.c.l.b16 %v239
    %v575 = vunpack.c.h.b16 %v239
    %v576 = vunpack.c.l.b16 %v240
    %v577 = vunpack.c.h.b16 %v240
    %v578 = vunpack.c.l.b16 %v241
    %v579 = vunpack.c.h.b16 %v241
    %v580 = vunpack.c.l.b16 %v242
    %v581 = vunpack.c.h.b16 %v242
    %v582 = vunpack.c.l.b16 %v243
    %v583 = vunpack.c.h.b16 %v243
    %v584 = vunpack.c.l.b16 %v244
    %v585 = vunpack.c.h.b16 %v244
    %v586 = vunpack.c.l.b16 %v245
    %v587 = vunpack.c.h.b16 %v245
    %v588 = vunpack.c.l.b16 %v246
    %v589 = vunpack.c.h.b16 %v246
    %v590 = vunpack.c.l.b16 %v247
    %v591 = vunpack.c.h.b16 %v247
    %v592 = vunpack.c.l.b16 %v248
    %v593 = vunpack.c.h.b16 %v248
    %v594 = vunpack.c.l.b16 %v249
    %v595 = vunpack.c.h.b16 %v249
    %v596 = vunpack.c.l.b16 %v250
    %v597 = vunpack.c.h.b16 %v250
    %v598 = vunpack.c.l.b16 %v251
    %v599 = vunpack.c.h.b16 %v251
    %v600 = vunpack.c.l.b16 %v252
    %v601 = vunpack.c.h.b16 %v252
    %v602 = vunpack.c.l.b16 %v253
    %v603 = vunpack.c.h.b16 %v253
    %v604 = vunpack.c.l.b16 %v254
    %v605 = vunpack.c.h.b16 %v254
    %v606 = vunpack.c.l.b16 %v255
    %v607 = vunpack.c.h.b16 %v255
    %v608 = vunpack.c.l.b16 %v256
    %v609 = vunpack.c.h.b16 %v256
    %v610 = vunpack.c.l.b16 %v257
    %v611 = vunpack.c.h.b16 %v257
    %v612 = vunpack.c.l.b16 %v258
    %v613 = vunpack.c.h.b16 %v258
    %v614 = vunpack.c.l.b16 %v259
    %v615 = vunpack.c.h.b16 %v259
    %v616 = vunpack.c.l.b16 %v260
    %v617 = vunpack.c.h.b16 %v260
    %v618 = vunpack.c.l.b16 %v261
    %v619 = vunpack.c.h.b16 %v261
    %v620 = vunpack.c.l.b16 %v262
    %v621 = vunpack.c.h.b16 %v262
    %v622 = vunpack.c.l.b16 %v263
    %v623 = vunpack.c.h.b16 %v263
    %v624 = vunpack.c.l.b16 %v264
    %v625 = vunpack.c.h.b16 %v264
    %v626 = vunpack.c.l.b16 %v265
    %v627 = vunpack.c.h.b16 %v265
    %v628 = vunpack.c.l.b16 %v266
    %v629 = vunpack.c.h.b16 %v266
    %v630 = vunpack.c.l.b16 %v267
    %v631 = vunpack.c.h.b16 %v267
    %v632 = vunpack.c.l.b16 %v268
    %v633 = vunpack.c.h.b16 %v268
    %v634 = vunpack.c.l.b16 %v269
    %v635 = vunpack.c.h.b16 %v269
    %v636 = vunpack.c.l.b16 %v270
    %v637 = vunpack.c.h.b16 %v270
    %v638 = vunpack.c.l.b16 %v271
    %v639 = vunpack.c.h.b16 %v271
    %v640 = vunpack.c.l.b16 %v272
    %v641 = vunpack.c.h.b16 %v272
    %v642 = vunpack.c.l.b16 %v273
    %v643 = vunpack.c.h.b16 %v273
    %v644 = vunpack.c.l.b16 %v274
    %v645 = vunpack.c.h.b16 %v274
    %v646 = vunpack.c.l.b16 %v275
    %v647 = vunpack.c.h.b16 %v275
    %v648 = vunpack.c.l.b16 %v276
    %v649 = vunpack.c.h.b16 %v276
    %v650 = vunpack.c.l.b16 %v277
    %v651 = vunpack.c.h.b16 %v277
    %v652 = vunpack.c.l.b16 %v278
    %v653 = vunpack.c.h.b16 %v278
    %v654 = vunpack.c.l.b16 %v279
    %v655 = vunpack.c.h.b16 %v279
    %v656 = vunpack.c.l.b16 %v280
    %v657 = vunpack.c.h.b16 %v280
    %v658 = vunpack.c.l.b16 %v281
    %v659 = vunpack.c.h.b16 %v281
    %v660 = vunpack.c.l.b16 %v282
    %v661 = vunpack.c.h.b16 %v282
    %v662 = vunpack.c.l.b16 %v283
    %v663 = vunpack.c.h.b16 %v283
    %v664 = vunpack.c.l.b16 %v284
    %v665 = vunpack.c.h.b16 %v284
    %v666 = vunpack.c.l.b16 %v285
    %v667 = vunpack.c.h.b16 %v285
    %v668 = vunpack.c.l.b16 %v286
    %v669 = vunpack.c.h.b16 %v286
    %v670 = vunpack.c.l.b16 %v287
    %v671 = vunpack.c.h.b16 %v287
    %v672 = vunpack.c.l.b16 %v288
    %v673 = vunpack.c.h.b16 %v288
    %v674 = vunpack.c.l.b16 %v289
    %v675 = vunpack.c.h.b16 %v289
    %v676 = vunpack.c.l.b16 %v290
    %v677 = vunpack.c.h.b16 %v290
    %v678 = vunpack.c.l.b16 %v291
    %v679 = vunpack.c.h.b16 %v291
    %v680 = vunpack.c.l.b16 %v292
    %v681 = vunpack.c.h.b16 %v292
    %v682 = vunpack.c.l.b16 %v293
    %v683 = vunpack.c.h.b16 %v293
    %v684 = vunpack.c.l.b16 %v294
    %v685 = vunpack.c.h.b16 %v294
    %v686 = vunpack.c.l.b16 %v295
    %v687 = vunpack.c.h.b16 %v295
    %v688 = vunpack.c.l.b16 %v296
    %v689 = vunpack.c.h.b16 %v296
    %v690 = vunpack.c.l.b16 %v297
    %v691 = vunpack.c.h.b16 %v297
    %v692 = vunpack.c.l.b16 %v298
    %v693 = vunpack.c.h.b16 %v298
    %v694 = vunpack.c.l.b16 %v299
    %v695 = vunpack.c.h.b16 %v299
    %v696 = vpack.c.b16 %v442, %v440
    %v697 = vpack.c.b16 %v443, %v441
    %v698 = vpack.c.b16 %v446, %v444
    %v699 = vpack.c.b16 %v447, %v445
    %v700 = vpack.c.b16 %v450, %v448
    %v701 = vpack.c.b16 %v451, %v449
    %v702 = vpack.c.b16 %v454, %v452
    %v703 = vpack.c.b16 %v455, %v453
    %v704 = vpack.c.b16 %v458, %v456
    %v705 = vpack.c.b16 %v459, %v457
    %v706 = vpack.c.b16 %v462, %v460
    %v707 = vpack.c.b16 %v463, %v461
    %v708 = vpack.c.b16 %v466, %v464
    %v709 = vpack.c.b16 %v467, %v465
    %v710 = vpack.c.b16 %v470, %v468
    %v711 = vpack.c.b16 %v471, %v469
    %v712 = vpack.c.b16 %v474, %v472
    %v713 = vpack.c.b16 %v475, %v473
    %v714 = vpack.c.b16 %v478, %v476
    %v715 = vpack.c.b16 %v479, %v477
    %v716 = vpack.c.b16 %v482, %v480
    %v717 = vpack.c.b16 %v483, %v481
    %v718 = vpack.c.b16 %v486, %v484
    %v719 = vpack.c.b16 %v487, %v485
    %v720 = vpack.c.b16 %v490, %v488
    %v721 = vpack.c.b16 %v491, %v489
    %v722 = vpack.c.b16 %v494, %v492
    %v723 = vpack.c.b16 %v495, %v493
    %v724 = vpack.c.b16 %v498, %v496
    %v725 = vpack.c.b16 %v499, %v497
    %v726 = vpack.c.b16 %v502, %v500
    %v727 = vpack.c.b16 %v503, %v501
    %v728 = vpack.c.b16 %v506, %v504
    %v729 = vpack.c.b16 %v507, %v505
    %v730 = vpack.c.b16 %v510, %v508
    %v731 = vpack.c.b16 %v511, %v509
    %v732 = vpack.c.b16 %v514, %v512
    %v733 = vpack.c.b16 %v515, %v513
    %v734 = vpack.c.b16 %v518, %v516
    %v735 = vpack.c.b16 %v519, %v517
    %v736 = vpack.c.b16 %v522, %v520
    %v737 = vpack.c.b16 %v523, %v521
    %v738 = vpack.c.b16 %v526, %v524
    %v739 = vpack.c.b16 %v527, %v525
    %v740 = vpack.c.b16 %v530, %v528
    %v741 = vpack.c.b16 %v531, %v529
    %v742 = vpack.c.b16 %v534, %v532
    %v743 = vpack.c.b16 %v535, %v533
    %v744 = vpack.c.b16 %v538, %v536
    %v745 = vpack.c.b16 %v539, %v537
    %v746 = vpack.c.b16 %v542, %v540
    %v747 = vpack.c.b16 %v543, %v541
    %v748 = vpack.c.b16 %v546, %v544
    %v749 = vpack.c.b16 %v547, %v545
    %v750 = vpack.c.b16 %v550, %v548
    %v751 = vpack.c.b16 %v551, %v549
    %v752 = vpack.c.b16 %v554, %v552
    %v753 = vpack.c.b16 %v555, %v553
    %v754 = vpack.c.b16 %v558, %v556
    %v755 = vpack.c.b16 %v559, %v557
    %v756 = vpack.c.b16 %v562, %v560
    %v757 = vpack.c.b16 %v563, %v561
    %v758 = vpack.c.b16 %v566, %v564
    %v759 = vpack.c.b16 %v567, %v565
    %v760 = vpack.c.b16 %v570, %v568
    %v761 = vpack.c.b16 %v571, %v569
    %v762 = vpack.c.b16 %v574, %v572
    %v763 = vpack.c.b16 %v575, %v573
    %v764 = vpack.c.b16 %v578, %v576
    %v765 = vpack.c.b16 %v579, %v577
    %v766 = vpack.c.b16 %v582, %v580
    %v767 = vpack.c.b16 %v583, %v581
    %v768 = vpack.c.b16 %v586, %v584
    %v769 = vpack.c.b16 %v587, %v585
    %v770 = vpack.c.b16 %v590, %v588
    %v771 = vpack.c.b16 %v591, %v589
    %v772 = vpack.c.b16 %v594, %v592
    %v773 = vpack.c.b16 %v595, %v593
    %v774 = vpack.c.b16 %v598, %v596
    %v775 = vpack.c.b16 %v599, %v597
    %v776 = vpack.c.b16 %v602, %v600
    %v777 = vpack.c.b16 %v603, %v601
    %v778 = vpack.c.b16 %v606, %v604
    %v779 = vpack.c.b16 %v607, %v605
    %v780 = vpack.c.b16 %v610, %v608
    %v781 = vpack.c.b16 %v611, %v609
    %v782 = vpack.c.b16 %v614, %v612
    %v783 = vpack.c.b16 %v615, %v613
    %v784 = vpack.c.b16 %v618, %v616
    %v785 = vpack.c.b16 %v619, %v617
    %v786 = vpack.c.b16 %v622, %v620
    %v787 = vpack.c.b16 %v623, %v621
    %v788 = vpack.c.b16 %v626, %v624
    %v789 = vpack.c.b16 %v627, %v625
    %v790 = vpack.c.b16 %v630, %v628
    %v791 = vpack.c.b16 %v631, %v629
    %v792 = vpack.c.b16 %v634, %v632
    %v793 = vpack.c.b16 %v635, %v633
    %v794 = vpack.c.b16 %v638, %v636
    %v795 = vpack.c.b16 %v639, %v637
    %v796 = vpack.c.b16 %v642, %v640
    %v797 = vpack.c.b16 %v643, %v641
    %v798 = vpack.c.b16 %v646, %v644
    %v799 = vpack.c.b16 %v647, %v645
    %v800 = vpack.c.b16 %v650, %v648
    %v801 = vpack.c.b16 %v651, %v649
    %v802 = vpack.c.b16 %v654, %v652
    %v803 = vpack.c.b16 %v655, %v653
    %v804 = vpack.c.b16 %v658, %v656
    %v805 = vpack.c.b16 %v659, %v657
    %v806 = vpack.c.b16 %v662, %v660
    %v807 = vpack.c.b16 %v663, %v661
    %v808 = vpack.c.b16 %v666, %v664
    %v809 = vpack.c.b16 %v667, %v665
    %v810 = vpack.c.b16 %v670, %v668
    %v811 = vpack.c.b16 %v671, %v669
    %v812 = vpack.c.b16 %v674, %v672
    %v813 = vpack.c.b16 %v675, %v673
    %v814 = vpack.c.b16 %v678, %v676
    %v815 = vpack.c.b16 %v679, %v677
    %v816 = vpack.c.b16 %v682, %v680
    %v817 = vpack.c.b16 %v683, %v681
    %v818 = vpack.c.b16 %v686, %v684
    %v819 = vpack.c.b16 %v687, %v685
    %v820 = vpack.c.b16 %v690, %v688
    %v821 = vpack.c.b16 %v691, %v689
    %v822 = vpack.c.b16 %v694, %v692
    %v823 = vpack.c.b16 %v695, %v693
    %952 = vmatprep.subr.bf16.mxu0 %v697
    %953 = vmatpush1.bf16.msra.mxu0 %v696
    %954 = vmatprep.subr.bf16.mxu0 %v699
    %955 = vmatpush1.bf16.msra.mxu0 %v698
    %956 = vmatprep.subr.bf16.mxu0 %v701
    %957 = vmatpush1.bf16.msra.mxu0 %v700
    %958 = vmatprep.subr.bf16.mxu0 %v703
    %959 = vmatpush1.bf16.msra.mxu0 %v702
    %960 = vmatprep.subr.bf16.mxu0 %v705
    %961 = vmatpush1.bf16.msra.mxu0 %v704
    %962 = vmatprep.subr.bf16.mxu0 %v707
    %963 = vmatpush1.bf16.msra.mxu0 %v706
    %964 = vmatprep.subr.bf16.mxu0 %v709
    %965 = vmatpush1.bf16.msra.mxu0 %v708
    %966 = vmatprep.subr.bf16.mxu0 %v711
    %967 = vmatpush1.bf16.msra.mxu0 %v710
    %968 = vmatprep.subr.bf16.mxu0 %v713
    %969 = vmatpush1.bf16.msra.mxu0 %v712
    %970 = vmatprep.subr.bf16.mxu0 %v715
    %971 = vmatpush1.bf16.msra.mxu0 %v714
    %972 = vmatprep.subr.bf16.mxu0 %v717
    %973 = vmatpush1.bf16.msra.mxu0 %v716
    %974 = vmatprep.subr.bf16.mxu0 %v719
    %975 = vmatpush1.bf16.msra.mxu0 %v718
    %976 = vmatprep.subr.bf16.mxu0 %v721
    %977 = vmatpush1.bf16.msra.mxu0 %v720
    %978 = vmatprep.subr.bf16.mxu0 %v723
    %979 = vmatpush1.bf16.msra.mxu0 %v722
    %980 = vmatprep.subr.bf16.mxu0 %v725
    %981 = vmatpush1.bf16.msra.mxu0 %v724
    %982 = vmatprep.subr.bf16.mxu0 %v727
    %983 = vmatpush1.bf16.msra.mxu0 %v726
    %984 = vmatprep.mubr.bf16.mxu0 %v165
    %985 = vmatmul.mubr.bf16.gmra.mrb[0].mxu0 %v164
    %v986 = vpop.f32.mrb[0].mxu0
    %v987 = vadd.f32 %v305, %v986
    %v988 = vpop.f32.mrb[0].mxu0
    %v989 = vadd.f32 %v309, %v988
    %v990 = vpop.f32.mrb[0].mxu0
    %v991 = vadd.f32 %v305, %v990
    %v992 = vpop.f32.mrb[0].mxu0
    %v993 = vadd.f32 %v309, %v992
    %994 = vdwg.mxu0
    %995 = vmatprep.subr.bf16.mxu0 %v729
    %996 = vmatpush1.bf16.msra.mxu0 %v728
    %997 = vmatprep.subr.bf16.mxu0 %v731
    %998 = vmatpush1.bf16.msra.mxu0 %v730
    %999 = vmatprep.subr.bf16.mxu0 %v733
    %1000 = vmatpush1.bf16.msra.mxu0 %v732
    %1001 = vmatprep.subr.bf16.mxu0 %v735
    %1002 = vmatpush1.bf16.msra.mxu0 %v734
    %1003 = vmatprep.subr.bf16.mxu0 %v737
    %1004 = vmatpush1.bf16.msra.mxu0 %v736
    %1005 = vmatprep.subr.bf16.mxu0 %v739
    %1006 = vmatpush1.bf16.msra.mxu0 %v738
    %1007 = vmatprep.subr.bf16.mxu0 %v741
    %1008 = vmatpush1.bf16.msra.mxu0 %v740
    %1009 = vmatprep.subr.bf16.mxu0 %v743
    %1010 = vmatpush1.bf16.msra.mxu0 %v742
    %1011 = vmatprep.subr.bf16.mxu0 %v745
    %1012 = vmatpush1.bf16.msra.mxu0 %v744
    %1013 = vmatprep.subr.bf16.mxu0 %v747
    %1014 = vmatpush1.bf16.msra.mxu0 %v746
    %1015 = vmatprep.subr.bf16.mxu0 %v749
    %1016 = vmatpush1.bf16.msra.mxu0 %v748
    %1017 = vmatprep.subr.bf16.mxu0 %v751
    %1018 = vmatpush1.bf16.msra.mxu0 %v750
    %1019 = vmatprep.subr.bf16.mxu0 %v753
    %1020 = vmatpush1.bf16.msra.mxu0 %v752
    %1021 = vmatprep.subr.bf16.mxu0 %v755
    %1022 = vmatpush1.bf16.msra.mxu0 %v754
    %1023 = vmatprep.subr.bf16.mxu0 %v757
    %1024 = vmatpush1.bf16.msra.mxu0 %v756
    %1025 = vmatprep.subr.bf16.mxu0 %v759
    %1026 = vmatpush1.bf16.msra.mxu0 %v758
    %1027 = vmatprep.mubr.bf16.mxu0 %v167
    %1028 = vmatmul.mubr.bf16.gmra.mrb[0].mxu0 %v166
    %v1029 = vpop.f32.mrb[0].mxu0
    %v1030 = vadd.f32 %v987, %v1029
    %v1031 = vpop.f32.mrb[0].mxu0
    %v1032 = vadd.f32 %v989, %v1031
    %v1033 = vpop.f32.mrb[0].mxu0
    %v1034 = vadd.f32 %v991, %v1033
    %v1035 = vpop.f32.mrb[0].mxu0
    %v1036 = vadd.f32 %v993, %v1035
    %1037 = vdwg.mxu0
    %1038 = vmatprep.subr.bf16.mxu0 %v761
    %1039 = vmatpush1.bf16.msra.mxu0 %v760
    %1040 = vmatprep.subr.bf16.mxu0 %v763
    %1041 = vmatpush1.bf16.msra.mxu0 %v762
    %1042 = vmatprep.subr.bf16.mxu0 %v765
    %1043 = vmatpush1.bf16.msra.mxu0 %v764
    %1044 = vmatprep.subr.bf16.mxu0 %v767
    %1045 = vmatpush1.bf16.msra.mxu0 %v766
    %1046 = vmatprep.subr.bf16.mxu0 %v769
    %1047 = vmatpush1.bf16.msra.mxu0 %v768
    %1048 = vmatprep.subr.bf16.mxu0 %v771
    %1049 = vmatpush1.bf16.msra.mxu0 %v770
    %1050 = vmatprep.subr.bf16.mxu0 %v773
    %1051 = vmatpush1.bf16.msra.mxu0 %v772
    %1052 = vmatprep.subr.bf16.mxu0 %v775
    %1053 = vmatpush1.bf16.msra.mxu0 %v774
    %1054 = vmatprep.subr.bf16.mxu0 %v777
    %1055 = vmatpush1.bf16.msra.mxu0 %v776
    %1056 = vmatprep.subr.bf16.mxu0 %v779
    %1057 = vmatpush1.bf16.msra.mxu0 %v778
    %1058 = vmatprep.subr.bf16.mxu0 %v781
    %1059 = vmatpush1.bf16.msra.mxu0 %v780
    %1060 = vmatprep.subr.bf16.mxu0 %v783
    %1061 = vmatpush1.bf16.msra.mxu0 %v782
    %1062 = vmatprep.subr.bf16.mxu0 %v785
    %1063 = vmatpush1.bf16.msra.mxu0 %v784
    %1064 = vmatprep.subr.bf16.mxu0 %v787
    %1065 = vmatpush1.bf16.msra.mxu0 %v786
    %1066 = vmatprep.subr.bf16.mxu0 %v789
    %1067 = vmatpush1.bf16.msra.mxu0 %v788
    %1068 = vmatprep.subr.bf16.mxu0 %v791
    %1069 = vmatpush1.bf16.msra.mxu0 %v790
    %1070 = vmatprep.mubr.bf16.mxu0 %v169
    %1071 = vmatmul.mubr.bf16.gmra.mrb[0].mxu0 %v168
    %v1072 = vpop.f32.mrb[0].mxu0
    %v1073 = vadd.f32 %v1030, %v1072
    %v1074 = vpop.f32.mrb[0].mxu0
    %v1075 = vadd.f32 %v1032, %v1074
    %v1076 = vpop.f32.mrb[0].mxu0
    %v1077 = vadd.f32 %v1034, %v1076
    %v1078 = vpop.f32.mrb[0].mxu0
    %v1079 = vadd.f32 %v1036, %v1078
    %1080 = vdwg.mxu0
    %1081 = vmatprep.subr.bf16.mxu0 %v793
    %1082 = vmatpush1.bf16.msra.mxu0 %v792
    %1083 = vmatprep.subr.bf16.mxu0 %v795
    %1084 = vmatpush1.bf16.msra.mxu0 %v794
    %1085 = vmatprep.subr.bf16.mxu0 %v797
    %1086 = vmatpush1.bf16.msra.mxu0 %v796
    %1087 = vmatprep.subr.bf16.mxu0 %v799
    %1088 = vmatpush1.bf16.msra.mxu0 %v798
    %1089 = vmatprep.subr.bf16.mxu0 %v801
    %1090 = vmatpush1.bf16.msra.mxu0 %v800
    %1091 = vmatprep.subr.bf16.mxu0 %v803
    %1092 = vmatpush1.bf16.msra.mxu0 %v802
    %1093 = vmatprep.subr.bf16.mxu0 %v805
    %1094 = vmatpush1.bf16.msra.mxu0 %v804
    %1095 = vmatprep.subr.bf16.mxu0 %v807
    %1096 = vmatpush1.bf16.msra.mxu0 %v806
    %1097 = vmatprep.subr.bf16.mxu0 %v809
    %1098 = vmatpush1.bf16.msra.mxu0 %v808
    %1099 = vmatprep.subr.bf16.mxu0 %v811
    %1100 = vmatpush1.bf16.msra.mxu0 %v810
    %1101 = vmatprep.subr.bf16.mxu0 %v813
    %1102 = vmatpush1.bf16.msra.mxu0 %v812
    %1103 = vmatprep.subr.bf16.mxu0 %v815
    %1104 = vmatpush1.bf16.msra.mxu0 %v814
    %1105 = vmatprep.subr.bf16.mxu0 %v817
    %1106 = vmatpush1.bf16.msra.mxu0 %v816
    %1107 = vmatprep.subr.bf16.mxu0 %v819
    %1108 = vmatpush1.bf16.msra.mxu0 %v818
    %1109 = vmatprep.subr.bf16.mxu0 %v821
    %1110 = vmatpush1.bf16.msra.mxu0 %v820
    %1111 = vmatprep.subr.bf16.mxu0 %v823
    %1112 = vmatpush1.bf16.msra.mxu0 %v822
    %1113 = vmatprep.mubr.bf16.mxu0 %v171
    %1114 = vmatmul.mubr.bf16.gmra.mrb[0].mxu0 %v170
    %v1115 = vpop.f32.mrb[0].mxu0
    %v1116 = vadd.f32 %v1073, %v1115
    %v1117 = vpop.f32.mrb[0].mxu0
    %v1118 = vadd.f32 %v1075, %v1117
    %v1119 = vpop.f32.mrb[0].mxu0
    %v1120 = vadd.f32 %v1077, %v1119
    %v1121 = vpop.f32.mrb[0].mxu0
    %v1122 = vadd.f32 %v1079, %v1121
    %1123 = vdwg.mxu0
    %v1124 = vmax.f32 %v1116, 0.0
    %v1125 = vmax.f32 %v1118, 0.0
    %v1126 = vmax.f32 %v1120, 0.0
    %v1127 = vmax.f32 %v1122, 0.0
    %v1128 = vpack.c.bf16 %v1126, %v1124
    %v1129 = vpack.c.bf16 %v1127, %v1125
    %v1130 = vld [vmem:[#allocation6] sm:$0xf]
    %v1131 = vld [vmem:[#allocation6 + $0x4] sm:$0xf]
    %v1132 = vld [vmem:[#allocation6 + $0x8] sm:$0xf]
    %v1133 = vld [vmem:[#allocation6 + $0xc] sm:$0xf]
    %v1134 = vld [vmem:[#allocation6 + $0x10] sm:$0xf]
    %v1135 = vld [vmem:[#allocation6 + $0x14] sm:$0xf]
    %v1136 = vld [vmem:[#allocation6 + $0x18] sm:$0xf]
    %v1137 = vld [vmem:[#allocation6 + $0x1c] sm:$0xf]
    %v1138 = vld [vmem:[#allocation6 + $0x20] sm:$0xf]
    %v1139 = vld [vmem:[#allocation6 + $0x24] sm:$0xf]
    %v1140 = vld [vmem:[#allocation6 + $0x28] sm:$0xf]
    %v1141 = vld [vmem:[#allocation6 + $0x2c] sm:$0xf]
    %v1142 = vld [vmem:[#allocation6 + $0x30] sm:$0xf]
    %v1143 = vld [vmem:[#allocation6 + $0x34] sm:$0xf]
    %v1144 = vld [vmem:[#allocation6 + $0x38] sm:$0xf]
    %v1145 = vld [vmem:[#allocation6 + $0x3c] sm:$0xf]
    %v1146 = vld [vmem:[%s4] sm:$0x1]
    %v1148 = vlaneseq
    %v1149 = vshrl.u32 %v1148, 7
    %v1150 = vsub.s32 0, %v1149
    %v1151 = vrot.slane %v1146, %v1150
    %v1169 = vunpack.c.l.b16 %v1130
    %v1170 = vunpack.c.l.b16 %v1131
    %v1171 = vunpack.c.l.b16 %v1132
    %v1172 = vunpack.c.l.b16 %v1133
    %v1173 = vunpack.c.l.b16 %v1134
    %v1174 = vunpack.c.l.b16 %v1135
    %v1175 = vunpack.c.l.b16 %v1136
    %v1176 = vunpack.c.l.b16 %v1137
    %v1177 = vunpack.c.l.b16 %v1138
    %v1178 = vunpack.c.l.b16 %v1139
    %v1179 = vunpack.c.l.b16 %v1140
    %v1180 = vunpack.c.l.b16 %v1141
    %v1181 = vunpack.c.l.b16 %v1142
    %v1182 = vunpack.c.l.b16 %v1143
    %v1183 = vunpack.c.l.b16 %v1144
    %v1184 = vunpack.c.l.b16 %v1145
    %v1185 = vpack.c.b16 %v1170, %v1169
    %v1186 = vpack.c.b16 %v1172, %v1171
    %v1187 = vpack.c.b16 %v1174, %v1173
    %v1188 = vpack.c.b16 %v1176, %v1175
    %v1189 = vpack.c.b16 %v1178, %v1177
    %v1190 = vpack.c.b16 %v1180, %v1179
    %v1191 = vpack.c.b16 %v1182, %v1181
    %v1192 = vpack.c.b16 %v1184, %v1183
    %1201 = vmatprep.subr.bf16.mxu0 0
    %1202 = vmatpush1.bf16.msra.mxu0 %v1185
    %1203 = vmatprep.subr.bf16.mxu0 0
    %1204 = vmatpush1.bf16.msra.mxu0 %v1186
    %1205 = vmatprep.subr.bf16.mxu0 0
    %1206 = vmatpush1.bf16.msra.mxu0 %v1187
    %1207 = vmatprep.subr.bf16.mxu0 0
    %1208 = vmatpush1.bf16.msra.mxu0 %v1188
    %1209 = vmatprep.subr.bf16.mxu0 0
    %1210 = vmatpush1.bf16.msra.mxu0 %v1189
    %1211 = vmatprep.subr.bf16.mxu0 0
    %1212 = vmatpush1.bf16.msra.mxu0 %v1190
    %1213 = vmatprep.subr.bf16.mxu0 0
    %1214 = vmatpush1.bf16.msra.mxu0 %v1191
    %1215 = vmatprep.subr.bf16.mxu0 0
    %1216 = vmatpush1.bf16.msra.mxu0 %v1192
    %1217 = vmatprep.subr.bf16.mxu0 0
    %1218 = vmatpush1.bf16.msra.mxu0 0
    %1219 = vmatprep.subr.bf16.mxu0 0
    %1220 = vmatpush1.bf16.msra.mxu0 0
    %1221 = vmatprep.subr.bf16.mxu0 0
    %1222 = vmatpush1.bf16.msra.mxu0 0
    %1223 = vmatprep.subr.bf16.mxu0 0
    %1224 = vmatpush1.bf16.msra.mxu0 0
    %1225 = vmatprep.subr.bf16.mxu0 0
    %1226 = vmatpush1.bf16.msra.mxu0 0
    %1227 = vmatprep.subr.bf16.mxu0 0
    %1228 = vmatpush1.bf16.msra.mxu0 0
    %1229 = vmatprep.subr.bf16.mxu0 0
    %1230 = vmatpush1.bf16.msra.mxu0 0
    %1231 = vmatprep.subr.bf16.mxu0 0
    %1232 = vmatpush1.bf16.msra.mxu0 0
    %1233 = vmatprep.mubr.bf16.mxu0 0
    %1234 = vmatmul.mubr.bf16.gmra.mrb[0].mxu0 %v1128
    %v1235 = vpop.f32.mrb[0].mxu0
    %v1236 = vadd.f32 %v1151, %v1235
    %v1237 = vpop.f32.mrb[0].mxu0
    %v1238 = vpop.f32.mrb[0].mxu0
    %v1239 = vadd.f32 %v1151, %v1238
    %v1240 = vpop.f32.mrb[0].mxu0
    %1241 = vdwg.mxu0
    %v1242 = vpack.c.bf16 %v1239, %v1236
    %v1244 = vunpack.c.l.b16 %v1242
    %v1245 = vunpack.c.h.b16 %v1242
    %v1246 = vpack.c.b16 %v1244, %v1244
    %v1247 = vpack.c.b16 %v1245, %v1245
    %1250 = vst [vmem:[%s14] sm:$0xf] %v1246
    %1251 = vst [vmem:[%s14 + $0x4] sm:$0xf] %v1247
    %v1252 = vld [vmem:[#allocation7] sm:$0xf]
    %v1253 = vld [vmem:[#allocation7 + $0x4] sm:$0xf]
    %v1254 = vld [vmem:[#allocation7 + $0x8] sm:$0xf]
    %v1255 = vld [vmem:[#allocation7 + $0xc] sm:$0xf]
    %v1256 = vld [vmem:[#allocation7 + $0x10] sm:$0xf]
    %v1257 = vld [vmem:[#allocation7 + $0x14] sm:$0xf]
    %v1258 = vld [vmem:[#allocation7 + $0x18] sm:$0xf]
    %v1259 = vld [vmem:[#allocation7 + $0x1c] sm:$0xf]
    %v1260 = vld [vmem:[#allocation7 + $0x20] sm:$0xf]
    %v1261 = vld [vmem:[#allocation7 + $0x24] sm:$0xf]
    %v1262 = vld [vmem:[#allocation7 + $0x28] sm:$0xf]
    %v1263 = vld [vmem:[#allocation7 + $0x2c] sm:$0xf]
    %v1264 = vld [vmem:[#allocation7 + $0x30] sm:$0xf]
    %v1265 = vld [vmem:[#allocation7 + $0x34] sm:$0xf]
    %v1266 = vld [vmem:[#allocation7 + $0x38] sm:$0xf]
    %v1267 = vld [vmem:[#allocation7 + $0x3c] sm:$0xf]
    %v1268 = vld [vmem:[#allocation9] sm:$0x1]
    %v1270 = vlaneseq
    %v1271 = vshrl.u32 %v1270, 7
    %v1272 = vsub.s32 0, %v1271
    %v1273 = vrot.slane %v1268, %v1272
    %v1291 = vunpack.c.l.b16 %v1252
    %v1292 = vunpack.c.l.b16 %v1253
    %v1293 = vunpack.c.l.b16 %v1254
    %v1294 = vunpack.c.l.b16 %v1255
    %v1295 = vunpack.c.l.b16 %v1256
    %v1296 = vunpack.c.l.b16 %v1257
    %v1297 = vunpack.c.l.b16 %v1258
    %v1298 = vunpack.c.l.b16 %v1259
    %v1299 = vunpack.c.l.b16 %v1260
    %v1300 = vunpack.c.l.b16 %v1261
    %v1301 = vunpack.c.l.b16 %v1262
    %v1302 = vunpack.c.l.b16 %v1263
    %v1303 = vunpack.c.l.b16 %v1264
    %v1304 = vunpack.c.l.b16 %v1265
    %v1305 = vunpack.c.l.b16 %v1266
    %v1306 = vunpack.c.l.b16 %v1267
    %v1307 = vpack.c.b16 %v1292, %v1291
    %v1308 = vpack.c.b16 %v1294, %v1293
    %v1309 = vpack.c.b16 %v1296, %v1295
    %v1310 = vpack.c.b16 %v1298, %v1297
    %v1311 = vpack.c.b16 %v1300, %v1299
    %v1312 = vpack.c.b16 %v1302, %v1301
    %v1313 = vpack.c.b16 %v1304, %v1303
    %v1314 = vpack.c.b16 %v1306, %v1305
    %1323 = vmatprep.subr.bf16.mxu0 0
    %1324 = vmatpush1.bf16.msra.mxu0 %v1307
    %1325 = vmatprep.subr.bf16.mxu0 0
    %1326 = vmatpush1.bf16.msra.mxu0 %v1308
    %1327 = vmatprep.subr.bf16.mxu0 0
    %1328 = vmatpush1.bf16.msra.mxu0 %v1309
    %1329 = vmatprep.subr.bf16.mxu0 0
    %1330 = vmatpush1.bf16.msra.mxu0 %v1310
    %1331 = vmatprep.subr.bf16.mxu0 0
    %1332 = vmatpush1.bf16.msra.mxu0 %v1311
    %1333 = vmatprep.subr.bf16.mxu0 0
    %1334 = vmatpush1.bf16.msra.mxu0 %v1312
    %1335 = vmatprep.subr.bf16.mxu0 0
    %1336 = vmatpush1.bf16.msra.mxu0 %v1313
    %1337 = vmatprep.subr.bf16.mxu0 0
    %1338 = vmatpush1.bf16.msra.mxu0 %v1314
    %1339 = vmatprep.subr.bf16.mxu0 0
    %1340 = vmatpush1.bf16.msra.mxu0 0
    %1341 = vmatprep.subr.bf16.mxu0 0
    %1342 = vmatpush1.bf16.msra.mxu0 0
    %1343 = vmatprep.subr.bf16.mxu0 0
    %1344 = vmatpush1.bf16.msra.mxu0 0
    %1345 = vmatprep.subr.bf16.mxu0 0
    %1346 = vmatpush1.bf16.msra.mxu0 0
    %1347 = vmatprep.subr.bf16.mxu0 0
    %1348 = vmatpush1.bf16.msra.mxu0 0
    %1349 = vmatprep.subr.bf16.mxu0 0
    %1350 = vmatpush1.bf16.msra.mxu0 0
    %1351 = vmatprep.subr.bf16.mxu0 0
    %1352 = vmatpush1.bf16.msra.mxu0 0
    %1353 = vmatprep.subr.bf16.mxu0 0
    %1354 = vmatpush1.bf16.msra.mxu0 0
    %1355 = vmatprep.mubr.bf16.mxu0 0
    %1356 = vmatmul.mubr.bf16.gmra.mrb[0].mxu0 %v1242
    %v1357 = vpop.f32.mrb[0].mxu0
    %v1358 = vadd.f32 %v1273, %v1357
    %v1359 = vpop.f32.mrb[0].mxu0
    %v1360 = vpop.f32.mrb[0].mxu0
    %v1361 = vadd.f32 %v1273, %v1360
    %v1362 = vpop.f32.mrb[0].mxu0
    %1363 = vdwg.mxu0
    %v1364 = vmax.f32 %v1358, 0.0
    %v1365 = vmax.f32 %v1361, 0.0
    %v1366 = vpack.c.bf16 %v1365, %v1364
    %v1367 = vld [vmem:[#allocation10] sm:$0xff]
    %v1368 = vld [vmem:[#allocation10 + $0x8] sm:$0xff]
    %v1369 = vld [vmem:[#allocation10 + $0x10] sm:$0xff]
    %v1370 = vld [vmem:[#allocation10 + $0x18] sm:$0xff]
    %v1371 = vld [vmem:[#allocation10 + $0x20] sm:$0xff]
    %v1372 = vld [vmem:[#allocation10 + $0x28] sm:$0xff]
    %v1373 = vld [vmem:[#allocation10 + $0x30] sm:$0xff]
    %v1374 = vld [vmem:[#allocation10 + $0x38] sm:$0xff]
    %v1375 = vld [vmem:[#allocation10 + $0x40] sm:$0xff]
    %v1376 = vld [vmem:[#allocation10 + $0x48] sm:$0xff]
    %v1377 = vld [vmem:[#allocation10 + $0x50] sm:$0xff]
    %v1378 = vld [vmem:[#allocation10 + $0x58] sm:$0xff]
    %v1379 = vld [vmem:[#allocation10 + $0x60] sm:$0xff]
    %v1380 = vld [vmem:[#allocation10 + $0x68] sm:$0xff]
    %v1381 = vld [vmem:[#allocation10 + $0x70] sm:$0xff]
    %v1382 = vld [vmem:[#allocation10 + $0x78] sm:$0xff]
    %v1383 = vld [vmem:[#allocation10 + $0x80] sm:$0xff]
    %v1384 = vld [vmem:[#allocation10 + $0x88] sm:$0xff]
    %v1385 = vld [vmem:[#allocation10 + $0x90] sm:$0xff]
    %v1386 = vld [vmem:[#allocation10 + $0x98] sm:$0xff]
    %v1387 = vld [vmem:[#allocation10 + $0xa0] sm:$0xff]
    %v1388 = vld [vmem:[#allocation10 + $0xa8] sm:$0xff]
    %v1389 = vld [vmem:[#allocation10 + $0xb0] sm:$0xff]
    %v1390 = vld [vmem:[#allocation10 + $0xb8] sm:$0xff]
    %v1391 = vld [vmem:[#allocation10 + $0xc0] sm:$0xff]
    %v1392 = vld [vmem:[#allocation10 + $0xc8] sm:$0xff]
    %v1393 = vld [vmem:[#allocation10 + $0xd0] sm:$0xff]
    %v1394 = vld [vmem:[#allocation10 + $0xd8] sm:$0xff]
    %v1395 = vld [vmem:[#allocation10 + $0xe0] sm:$0xff]
    %v1396 = vld [vmem:[#allocation10 + $0xe8] sm:$0xff]
    %v1397 = vld [vmem:[#allocation10 + $0xf0] sm:$0xff]
    %v1398 = vld [vmem:[#allocation10 + $0xf8] sm:$0xff]
    %v1399 = vld [vmem:[#allocation10 + $0x100] sm:$0xff]
    %v1400 = vld [vmem:[#allocation10 + $0x108] sm:$0xff]
    %v1401 = vld [vmem:[#allocation10 + $0x110] sm:$0xff]
    %v1402 = vld [vmem:[#allocation10 + $0x118] sm:$0xff]
    %v1403 = vld [vmem:[#allocation10 + $0x120] sm:$0xff]
    %v1404 = vld [vmem:[#allocation10 + $0x128] sm:$0xff]
    %v1405 = vld [vmem:[#allocation10 + $0x130] sm:$0xff]
    %v1406 = vld [vmem:[#allocation10 + $0x138] sm:$0xff]
    %v1407 = vld [vmem:[#allocation10 + $0x140] sm:$0xff]
    %v1408 = vld [vmem:[#allocation10 + $0x148] sm:$0xff]
    %v1409 = vld [vmem:[#allocation10 + $0x150] sm:$0xff]
    %v1410 = vld [vmem:[#allocation10 + $0x158] sm:$0xff]
    %v1411 = vld [vmem:[#allocation10 + $0x160] sm:$0xff]
    %v1412 = vld [vmem:[#allocation10 + $0x168] sm:$0xff]
    %v1413 = vld [vmem:[#allocation10 + $0x170] sm:$0xff]
    %v1414 = vld [vmem:[#allocation10 + $0x178] sm:$0xff]
    %v1415 = vld [vmem:[#allocation10 + $0x180] sm:$0xff]
    %v1416 = vld [vmem:[#allocation10 + $0x188] sm:$0xff]
    %v1417 = vld [vmem:[#allocation10 + $0x190] sm:$0xff]
    %v1418 = vld [vmem:[#allocation10 + $0x198] sm:$0xff]
    %v1419 = vld [vmem:[#allocation10 + $0x1a0] sm:$0xff]
    %v1420 = vld [vmem:[#allocation10 + $0x1a8] sm:$0xff]
    %v1421 = vld [vmem:[#allocation10 + $0x1b0] sm:$0xff]
    %v1422 = vld [vmem:[#allocation10 + $0x1b8] sm:$0xff]
    %v1423 = vld [vmem:[#allocation10 + $0x1c0] sm:$0xff]
    %v1424 = vld [vmem:[#allocation10 + $0x1c8] sm:$0xff]
    %v1425 = vld [vmem:[#allocation10 + $0x1d0] sm:$0xff]
    %v1426 = vld [vmem:[#allocation10 + $0x1d8] sm:$0xff]
    %v1427 = vld [vmem:[#allocation10 + $0x1e0] sm:$0xff]
    %v1428 = vld [vmem:[#allocation10 + $0x1e8] sm:$0xff]
    %v1429 = vld [vmem:[#allocation10 + $0x1f0] sm:$0xff]
    %v1430 = vld [vmem:[#allocation10 + $0x1f8] sm:$0xff]
    %v1431 = vld [vmem:[#allocation12] sm:$0xff]
    %v1433 = vlaneseq
    %v1434 = vshrl.u32 %v1433, 7
    %v1435 = vsub.s32 0, %v1434
    %v1436 = vrot.slane %v1431, %v1435
    %v1437 = vlaneseq
    %v1438 = vshrl.u32 %v1437, 7
    %v1439 = vsub.s32 1, %v1438
    %v1440 = vrot.slane %v1431, %v1439
    %v1441 = vlaneseq
    %v1442 = vshrl.u32 %v1441, 7
    %v1443 = vsub.s32 2, %v1442
    %v1444 = vrot.slane %v1431, %v1443
    %v1445 = vlaneseq
    %v1446 = vshrl.u32 %v1445, 7
    %v1447 = vsub.s32 3, %v1446
    %v1448 = vrot.slane %v1431, %v1447
    %v1449 = vlaneseq
    %v1450 = vshrl.u32 %v1449, 7
    %v1451 = vsub.s32 4, %v1450
    %v1452 = vrot.slane %v1431, %v1451
    %v1453 = vlaneseq
    %v1454 = vshrl.u32 %v1453, 7
    %v1455 = vsub.s32 5, %v1454
    %v1456 = vrot.slane %v1431, %v1455
    %v1457 = vlaneseq
    %v1458 = vshrl.u32 %v1457, 7
    %v1459 = vsub.s32 6, %v1458
    %v1460 = vrot.slane %v1431, %v1459
    %v1461 = vlaneseq
    %v1462 = vshrl.u32 %v1461, 7
    %v1463 = vsub.s32 7, %v1462
    %v1464 = vrot.slane %v1431, %v1463
    %v1537 = vunpack.c.l.b16 %v1367
    %v1538 = vunpack.c.h.b16 %v1367
    %v1539 = vunpack.c.l.b16 %v1368
    %v1540 = vunpack.c.h.b16 %v1368
    %v1541 = vunpack.c.l.b16 %v1369
    %v1542 = vunpack.c.h.b16 %v1369
    %v1543 = vunpack.c.l.b16 %v1370
    %v1544 = vunpack.c.h.b16 %v1370
    %v1545 = vunpack.c.l.b16 %v1371
    %v1546 = vunpack.c.h.b16 %v1371
    %v1547 = vunpack.c.l.b16 %v1372
    %v1548 = vunpack.c.h.b16 %v1372
    %v1549 = vunpack.c.l.b16 %v1373
    %v1550 = vunpack.c.h.b16 %v1373
    %v1551 = vunpack.c.l.b16 %v1374
    %v1552 = vunpack.c.h.b16 %v1374
    %v1553 = vunpack.c.l.b16 %v1375
    %v1554 = vunpack.c.h.b16 %v1375
    %v1555 = vunpack.c.l.b16 %v1376
    %v1556 = vunpack.c.h.b16 %v1376
    %v1557 = vunpack.c.l.b16 %v1377
    %v1558 = vunpack.c.h.b16 %v1377
    %v1559 = vunpack.c.l.b16 %v1378
    %v1560 = vunpack.c.h.b16 %v1378
    %v1561 = vunpack.c.l.b16 %v1379
    %v1562 = vunpack.c.h.b16 %v1379
    %v1563 = vunpack.c.l.b16 %v1380
    %v1564 = vunpack.c.h.b16 %v1380
    %v1565 = vunpack.c.l.b16 %v1381
    %v1566 = vunpack.c.h.b16 %v1381
    %v1567 = vunpack.c.l.b16 %v1382
    %v1568 = vunpack.c.h.b16 %v1382
    %v1569 = vunpack.c.l.b16 %v1383
    %v1570 = vunpack.c.h.b16 %v1383
    %v1571 = vunpack.c.l.b16 %v1384
    %v1572 = vunpack.c.h.b16 %v1384
    %v1573 = vunpack.c.l.b16 %v1385
    %v1574 = vunpack.c.h.b16 %v1385
    %v1575 = vunpack.c.l.b16 %v1386
    %v1576 = vunpack.c.h.b16 %v1386
    %v1577 = vunpack.c.l.b16 %v1387
    %v1578 = vunpack.c.h.b16 %v1387
    %v1579 = vunpack.c.l.b16 %v1388
    %v1580 = vunpack.c.h.b16 %v1388
    %v1581 = vunpack.c.l.b16 %v1389
    %v1582 = vunpack.c.h.b16 %v1389
    %v1583 = vunpack.c.l.b16 %v1390
    %v1584 = vunpack.c.h.b16 %v1390
    %v1585 = vunpack.c.l.b16 %v1391
    %v1586 = vunpack.c.h.b16 %v1391
    %v1587 = vunpack.c.l.b16 %v1392
    %v1588 = vunpack.c.h.b16 %v1392
    %v1589 = vunpack.c.l.b16 %v1393
    %v1590 = vunpack.c.h.b16 %v1393
    %v1591 = vunpack.c.l.b16 %v1394
    %v1592 = vunpack.c.h.b16 %v1394
    %v1593 = vunpack.c.l.b16 %v1395
    %v1594 = vunpack.c.h.b16 %v1395
    %v1595 = vunpack.c.l.b16 %v1396
    %v1596 = vunpack.c.h.b16 %v1396
    %v1597 = vunpack.c.l.b16 %v1397
    %v1598 = vunpack.c.h.b16 %v1397
    %v1599 = vunpack.c.l.b16 %v1398
    %v1600 = vunpack.c.h.b16 %v1398
    %v1601 = vunpack.c.l.b16 %v1399
    %v1602 = vunpack.c.h.b16 %v1399
    %v1603 = vunpack.c.l.b16 %v1400
    %v1604 = vunpack.c.h.b16 %v1400
    %v1605 = vunpack.c.l.b16 %v1401
    %v1606 = vunpack.c.h.b16 %v1401
    %v1607 = vunpack.c.l.b16 %v1402
    %v1608 = vunpack.c.h.b16 %v1402
    %v1609 = vunpack.c.l.b16 %v1403
    %v1610 = vunpack.c.h.b16 %v1403
    %v1611 = vunpack.c.l.b16 %v1404
    %v1612 = vunpack.c.h.b16 %v1404
    %v1613 = vunpack.c.l.b16 %v1405
    %v1614 = vunpack.c.h.b16 %v1405
    %v1615 = vunpack.c.l.b16 %v1406
    %v1616 = vunpack.c.h.b16 %v1406
    %v1617 = vunpack.c.l.b16 %v1407
    %v1618 = vunpack.c.h.b16 %v1407
    %v1619 = vunpack.c.l.b16 %v1408
    %v1620 = vunpack.c.h.b16 %v1408
    %v1621 = vunpack.c.l.b16 %v1409
    %v1622 = vunpack.c.h.b16 %v1409
    %v1623 = vunpack.c.l.b16 %v1410
    %v1624 = vunpack.c.h.b16 %v1410
    %v1625 = vunpack.c.l.b16 %v1411
    %v1626 = vunpack.c.h.b16 %v1411
    %v1627 = vunpack.c.l.b16 %v1412
    %v1628 = vunpack.c.h.b16 %v1412
    %v1629 = vunpack.c.l.b16 %v1413
    %v1630 = vunpack.c.h.b16 %v1413
    %v1631 = vunpack.c.l.b16 %v1414
    %v1632 = vunpack.c.h.b16 %v1414
    %v1633 = vunpack.c.l.b16 %v1415
    %v1634 = vunpack.c.h.b16 %v1415
    %v1635 = vunpack.c.l.b16 %v1416
    %v1636 = vunpack.c.h.b16 %v1416
    %v1637 = vunpack.c.l.b16 %v1417
    %v1638 = vunpack.c.h.b16 %v1417
    %v1639 = vunpack.c.l.b16 %v1418
    %v1640 = vunpack.c.h.b16 %v1418
    %v1641 = vunpack.c.l.b16 %v1419
    %v1642 = vunpack.c.h.b16 %v1419
    %v1643 = vunpack.c.l.b16 %v1420
    %v1644 = vunpack.c.h.b16 %v1420
    %v1645 = vunpack.c.l.b16 %v1421
    %v1646 = vunpack.c.h.b16 %v1421
    %v1647 = vunpack.c.l.b16 %v1422
    %v1648 = vunpack.c.h.b16 %v1422
    %v1649 = vunpack.c.l.b16 %v1423
    %v1650 = vunpack.c.h.b16 %v1423
    %v1651 = vunpack.c.l.b16 %v1424
    %v1652 = vunpack.c.h.b16 %v1424
    %v1653 = vunpack.c.l.b16 %v1425
    %v1654 = vunpack.c.h.b16 %v1425
    %v1655 = vunpack.c.l.b16 %v1426
    %v1656 = vunpack.c.h.b16 %v1426
    %v1657 = vunpack.c.l.b16 %v1427
    %v1658 = vunpack.c.h.b16 %v1427
    %v1659 = vunpack.c.l.b16 %v1428
    %v1660 = vunpack.c.h.b16 %v1428
    %v1661 = vunpack.c.l.b16 %v1429
    %v1662 = vunpack.c.h.b16 %v1429
    %v1663 = vunpack.c.l.b16 %v1430
    %v1664 = vunpack.c.h.b16 %v1430
    %v1665 = vpack.c.b16 %v1545, %v1537
    %v1666 = vpack.c.b16 %v1546, %v1538
    %v1667 = vpack.c.b16 %v1547, %v1539
    %v1668 = vpack.c.b16 %v1548, %v1540
    %v1669 = vpack.c.b16 %v1549, %v1541
    %v1670 = vpack.c.b16 %v1550, %v1542
    %v1671 = vpack.c.b16 %v1551, %v1543
    %v1672 = vpack.c.b16 %v1552, %v1544
    %v1673 = vpack.c.b16 %v1561, %v1553
    %v1674 = vpack.c.b16 %v1562, %v1554
    %v1675 = vpack.c.b16 %v1563, %v1555
    %v1676 = vpack.c.b16 %v1564, %v1556
    %v1677 = vpack.c.b16 %v1565, %v1557
    %v1678 = vpack.c.b16 %v1566, %v1558
    %v1679 = vpack.c.b16 %v1567, %v1559
    %v1680 = vpack.c.b16 %v1568, %v1560
    %v1681 = vpack.c.b16 %v1577, %v1569
    %v1682 = vpack.c.b16 %v1578, %v1570
    %v1683 = vpack.c.b16 %v1579, %v1571
    %v1684 = vpack.c.b16 %v1580, %v1572
    %v1685 = vpack.c.b16 %v1581, %v1573
    %v1686 = vpack.c.b16 %v1582, %v1574
    %v1687 = vpack.c.b16 %v1583, %v1575
    %v1688 = vpack.c.b16 %v1584, %v1576
    %v1689 = vpack.c.b16 %v1593, %v1585
    %v1690 = vpack.c.b16 %v1594, %v1586
    %v1691 = vpack.c.b16 %v1595, %v1587
    %v1692 = vpack.c.b16 %v1596, %v1588
    %v1693 = vpack.c.b16 %v1597, %v1589
    %v1694 = vpack.c.b16 %v1598, %v1590
    %v1695 = vpack.c.b16 %v1599, %v1591
    %v1696 = vpack.c.b16 %v1600, %v1592
    %v1697 = vpack.c.b16 %v1609, %v1601
    %v1698 = vpack.c.b16 %v1610, %v1602
    %v1699 = vpack.c.b16 %v1611, %v1603
    %v1700 = vpack.c.b16 %v1612, %v1604
    %v1701 = vpack.c.b16 %v1613, %v1605
    %v1702 = vpack.c.b16 %v1614, %v1606
    %v1703 = vpack.c.b16 %v1615, %v1607
    %v1704 = vpack.c.b16 %v1616, %v1608
    %v1705 = vpack.c.b16 %v1625, %v1617
    %v1706 = vpack.c.b16 %v1626, %v1618
    %v1707 = vpack.c.b16 %v1627, %v1619
    %v1708 = vpack.c.b16 %v1628, %v1620
    %v1709 = vpack.c.b16 %v1629, %v1621
    %v1710 = vpack.c.b16 %v1630, %v1622
    %v1711 = vpack.c.b16 %v1631, %v1623
    %v1712 = vpack.c.b16 %v1632, %v1624
    %v1713 = vpack.c.b16 %v1641, %v1633
    %v1714 = vpack.c.b16 %v1642, %v1634
    %v1715 = vpack.c.b16 %v1643, %v1635
    %v1716 = vpack.c.b16 %v1644, %v1636
    %v1717 = vpack.c.b16 %v1645, %v1637
    %v1718 = vpack.c.b16 %v1646, %v1638
    %v1719 = vpack.c.b16 %v1647, %v1639
    %v1720 = vpack.c.b16 %v1648, %v1640
    %v1721 = vpack.c.b16 %v1657, %v1649
    %v1722 = vpack.c.b16 %v1658, %v1650
    %v1723 = vpack.c.b16 %v1659, %v1651
    %v1724 = vpack.c.b16 %v1660, %v1652
    %v1725 = vpack.c.b16 %v1661, %v1653
    %v1726 = vpack.c.b16 %v1662, %v1654
    %v1727 = vpack.c.b16 %v1663, %v1655
    %v1728 = vpack.c.b16 %v1664, %v1656
    %1793 = vmatprep.subr.bf16.mxu0 %v1666
    %1794 = vmatpush1.bf16.msra.mxu0 %v1665
    %1795 = vmatprep.subr.bf16.mxu0 %v1674
    %1796 = vmatpush1.bf16.msra.mxu0 %v1673
    %1797 = vmatprep.subr.bf16.mxu0 %v1682
    %1798 = vmatpush1.bf16.msra.mxu0 %v1681
    %1799 = vmatprep.subr.bf16.mxu0 %v1690
    %1800 = vmatpush1.bf16.msra.mxu0 %v1689
    %1801 = vmatprep.subr.bf16.mxu0 %v1698
    %1802 = vmatpush1.bf16.msra.mxu0 %v1697
    %1803 = vmatprep.subr.bf16.mxu0 %v1706
    %1804 = vmatpush1.bf16.msra.mxu0 %v1705
    %1805 = vmatprep.subr.bf16.mxu0 %v1714
    %1806 = vmatpush1.bf16.msra.mxu0 %v1713
    %1807 = vmatprep.subr.bf16.mxu0 %v1722
    %1808 = vmatpush1.bf16.msra.mxu0 %v1721
    %1809 = vmatprep.subr.bf16.mxu0 0
    %1810 = vmatpush1.bf16.msra.mxu0 0
    %1811 = vmatprep.subr.bf16.mxu0 0
    %1812 = vmatpush1.bf16.msra.mxu0 0
    %1813 = vmatprep.subr.bf16.mxu0 0
    %1814 = vmatpush1.bf16.msra.mxu0 0
    %1815 = vmatprep.subr.bf16.mxu0 0
    %1816 = vmatpush1.bf16.msra.mxu0 0
    %1817 = vmatprep.subr.bf16.mxu0 0
    %1818 = vmatpush1.bf16.msra.mxu0 0
    %1819 = vmatprep.subr.bf16.mxu0 0
    %1820 = vmatpush1.bf16.msra.mxu0 0
    %1821 = vmatprep.subr.bf16.mxu0 0
    %1822 = vmatpush1.bf16.msra.mxu0 0
    %1823 = vmatprep.subr.bf16.mxu0 0
    %1824 = vmatpush1.bf16.msra.mxu0 0
    %1825 = vmatprep.mubr.bf16.mxu0 0
    %1826 = vmatmul.mubr.bf16.gmra.mrb[0].mxu0 %v1366
    %v1827 = vpop.f32.mrb[0].mxu0
    %v1828 = vadd.f32 %v1436, %v1827
    %v1829 = vpop.f32.mrb[0].mxu0
    %v1830 = vadd.f32 %v1440, %v1829
    %v1831 = vpop.f32.mrb[0].mxu0
    %v1832 = vadd.f32 %v1436, %v1831
    %v1833 = vpop.f32.mrb[0].mxu0
    %v1834 = vadd.f32 %v1440, %v1833
    %1835 = vdwg.mxu0
    %1836 = vmatprep.subr.bf16.mxu0 %v1668
    %1837 = vmatpush1.bf16.msra.mxu0 %v1667
    %1838 = vmatprep.subr.bf16.mxu0 %v1676
    %1839 = vmatpush1.bf16.msra.mxu0 %v1675
    %1840 = vmatprep.subr.bf16.mxu0 %v1684
    %1841 = vmatpush1.bf16.msra.mxu0 %v1683
    %1842 = vmatprep.subr.bf16.mxu0 %v1692
    %1843 = vmatpush1.bf16.msra.mxu0 %v1691
    %1844 = vmatprep.subr.bf16.mxu0 %v1700
    %1845 = vmatpush1.bf16.msra.mxu0 %v1699
    %1846 = vmatprep.subr.bf16.mxu0 %v1708
    %1847 = vmatpush1.bf16.msra.mxu0 %v1707
    %1848 = vmatprep.subr.bf16.mxu0 %v1716
    %1849 = vmatpush1.bf16.msra.mxu0 %v1715
    %1850 = vmatprep.subr.bf16.mxu0 %v1724
    %1851 = vmatpush1.bf16.msra.mxu0 %v1723
    %1852 = vmatprep.subr.bf16.mxu0 0
    %1853 = vmatpush1.bf16.msra.mxu0 0
    %1854 = vmatprep.subr.bf16.mxu0 0
    %1855 = vmatpush1.bf16.msra.mxu0 0
    %1856 = vmatprep.subr.bf16.mxu0 0
    %1857 = vmatpush1.bf16.msra.mxu0 0
    %1858 = vmatprep.subr.bf16.mxu0 0
    %1859 = vmatpush1.bf16.msra.mxu0 0
    %1860 = vmatprep.subr.bf16.mxu0 0
    %1861 = vmatpush1.bf16.msra.mxu0 0
    %1862 = vmatprep.subr.bf16.mxu0 0
    %1863 = vmatpush1.bf16.msra.mxu0 0
    %1864 = vmatprep.subr.bf16.mxu0 0
    %1865 = vmatpush1.bf16.msra.mxu0 0
    %1866 = vmatprep.subr.bf16.mxu0 0
    %1867 = vmatpush1.bf16.msra.mxu0 0
    %1868 = vmatprep.mubr.bf16.mxu0 0
    %1869 = vmatmul.mubr.bf16.gmra.mrb[0].mxu0 %v1366
    %v1870 = vpop.f32.mrb[0].mxu0
    %v1871 = vadd.f32 %v1444, %v1870
    %v1872 = vpop.f32.mrb[0].mxu0
    %v1873 = vadd.f32 %v1448, %v1872
    %v1874 = vpop.f32.mrb[0].mxu0
    %v1875 = vadd.f32 %v1444, %v1874
    %v1876 = vpop.f32.mrb[0].mxu0
    %v1877 = vadd.f32 %v1448, %v1876
    %1878 = vdwg.mxu0
    %1879 = vmatprep.subr.bf16.mxu0 %v1670
    %1880 = vmatpush1.bf16.msra.mxu0 %v1669
    %1881 = vmatprep.subr.bf16.mxu0 %v1678
    %1882 = vmatpush1.bf16.msra.mxu0 %v1677
    %1883 = vmatprep.subr.bf16.mxu0 %v1686
    %1884 = vmatpush1.bf16.msra.mxu0 %v1685
    %1885 = vmatprep.subr.bf16.mxu0 %v1694
    %1886 = vmatpush1.bf16.msra.mxu0 %v1693
    %1887 = vmatprep.subr.bf16.mxu0 %v1702
    %1888 = vmatpush1.bf16.msra.mxu0 %v1701
    %1889 = vmatprep.subr.bf16.mxu0 %v1710
    %1890 = vmatpush1.bf16.msra.mxu0 %v1709
    %1891 = vmatprep.subr.bf16.mxu0 %v1718
    %1892 = vmatpush1.bf16.msra.mxu0 %v1717
    %1893 = vmatprep.subr.bf16.mxu0 %v1726
    %1894 = vmatpush1.bf16.msra.mxu0 %v1725
    %1895 = vmatprep.subr.bf16.mxu0 0
    %1896 = vmatpush1.bf16.msra.mxu0 0
    %1897 = vmatprep.subr.bf16.mxu0 0
    %1898 = vmatpush1.bf16.msra.mxu0 0
    %1899 = vmatprep.subr.bf16.mxu0 0
    %1900 = vmatpush1.bf16.msra.mxu0 0
    %1901 = vmatprep.subr.bf16.mxu0 0
    %1902 = vmatpush1.bf16.msra.mxu0 0
    %1903 = vmatprep.subr.bf16.mxu0 0
    %1904 = vmatpush1.bf16.msra.mxu0 0
    %1905 = vmatprep.subr.bf16.mxu0 0
    %1906 = vmatpush1.bf16.msra.mxu0 0
    %1907 = vmatprep.subr.bf16.mxu0 0
    %1908 = vmatpush1.bf16.msra.mxu0 0
    %1909 = vmatprep.subr.bf16.mxu0 0
    %1910 = vmatpush1.bf16.msra.mxu0 0
    %1911 = vmatprep.mubr.bf16.mxu0 0
    %1912 = vmatmul.mubr.bf16.gmra.mrb[0].mxu0 %v1366
    %v1913 = vpop.f32.mrb[0].mxu0
    %v1914 = vadd.f32 %v1452, %v1913
    %v1915 = vpop.f32.mrb[0].mxu0
    %v1916 = vadd.f32 %v1456, %v1915
    %v1917 = vpop.f32.mrb[0].mxu0
    %v1918 = vadd.f32 %v1452, %v1917
    %v1919 = vpop.f32.mrb[0].mxu0
    %v1920 = vadd.f32 %v1456, %v1919
    %1921 = vdwg.mxu0
    %1922 = vmatprep.subr.bf16.mxu0 %v1672
    %1923 = vmatpush1.bf16.msra.mxu0 %v1671
    %1924 = vmatprep.subr.bf16.mxu0 %v1680
    %1925 = vmatpush1.bf16.msra.mxu0 %v1679
    %1926 = vmatprep.subr.bf16.mxu0 %v1688
    %1927 = vmatpush1.bf16.msra.mxu0 %v1687
    %1928 = vmatprep.subr.bf16.mxu0 %v1696
    %1929 = vmatpush1.bf16.msra.mxu0 %v1695
    %1930 = vmatprep.subr.bf16.mxu0 %v1704
    %1931 = vmatpush1.bf16.msra.mxu0 %v1703
    %1932 = vmatprep.subr.bf16.mxu0 %v1712
    %1933 = vmatpush1.bf16.msra.mxu0 %v1711
    %1934 = vmatprep.subr.bf16.mxu0 %v1720
    %1935 = vmatpush1.bf16.msra.mxu0 %v1719
    %1936 = vmatprep.subr.bf16.mxu0 %v1728
    %1937 = vmatpush1.bf16.msra.mxu0 %v1727
    %1938 = vmatprep.subr.bf16.mxu0 0
    %1939 = vmatpush1.bf16.msra.mxu0 0
    %1940 = vmatprep.subr.bf16.mxu0 0
    %1941 = vmatpush1.bf16.msra.mxu0 0
    %1942 = vmatprep.subr.bf16.mxu0 0
    %1943 = vmatpush1.bf16.msra.mxu0 0
    %1944 = vmatprep.subr.bf16.mxu0 0
    %1945 = vmatpush1.bf16.msra.mxu0 0
    %1946 = vmatprep.subr.bf16.mxu0 0
    %1947 = vmatpush1.bf16.msra.mxu0 0
    %1948 = vmatprep.subr.bf16.mxu0 0
    %1949 = vmatpush1.bf16.msra.mxu0 0
    %1950 = vmatprep.subr.bf16.mxu0 0
    %1951 = vmatpush1.bf16.msra.mxu0 0
    %1952 = vmatprep.subr.bf16.mxu0 0
    %1953 = vmatpush1.bf16.msra.mxu0 0
    %1954 = vmatprep.mubr.bf16.mxu0 0
    %1955 = vmatmul.mubr.bf16.gmra.mrb[0].mxu0 %v1366
    %v1956 = vpop.f32.mrb[0].mxu0
    %v1957 = vadd.f32 %v1460, %v1956
    %v1958 = vpop.f32.mrb[0].mxu0
    %v1959 = vadd.f32 %v1464, %v1958
    %v1960 = vpop.f32.mrb[0].mxu0
    %v1961 = vadd.f32 %v1460, %v1960
    %v1962 = vpop.f32.mrb[0].mxu0
    %v1963 = vadd.f32 %v1464, %v1962
    %1964 = vdwg.mxu0
    %v1965 = vpack.c.bf16 %v1832, %v1828
    %v1966 = vpack.c.bf16 %v1834, %v1830
    %v1967 = vpack.c.bf16 %v1875, %v1871
    %v1968 = vpack.c.bf16 %v1877, %v1873
    %v1969 = vpack.c.bf16 %v1918, %v1914
    %v1970 = vpack.c.bf16 %v1920, %v1916
    %v1971 = vpack.c.bf16 %v1961, %v1957
    %v1972 = vpack.c.bf16 %v1963, %v1959
    %v1981 = vunpack.c.l.b16 %v1965
    %v1982 = vunpack.c.l.b16 %v1966
    %v1983 = vunpack.c.l.b16 %v1967
    %v1984 = vunpack.c.l.b16 %v1968
    %v1985 = vunpack.c.l.b16 %v1969
    %v1986 = vunpack.c.l.b16 %v1970
    %v1987 = vunpack.c.l.b16 %v1971
    %v1988 = vunpack.c.l.b16 %v1972
    %v1989 = vunpack.c.h.b16 %v1965
    %v1990 = vunpack.c.h.b16 %v1966
    %v1991 = vunpack.c.h.b16 %v1967
    %v1992 = vunpack.c.h.b16 %v1968
    %v1993 = vunpack.c.h.b16 %v1969
    %v1994 = vunpack.c.h.b16 %v1970
    %v1995 = vunpack.c.h.b16 %v1971
    %v1996 = vunpack.c.h.b16 %v1972
    %v1997 = vpack.c.b16 %v1982, %v1981
    %v1998 = vpack.c.b16 %v1984, %v1983
    %v1999 = vpack.c.b16 %v1986, %v1985
    %v2000 = vpack.c.b16 %v1988, %v1987
    %v2001 = vpack.c.b16 %v1990, %v1989
    %v2002 = vpack.c.b16 %v1992, %v1991
    %v2003 = vpack.c.b16 %v1994, %v1993
    %v2004 = vpack.c.b16 %v1996, %v1995
    %2013 = vst [vmem:[%s13] sm:$0xff] %v1997
    %2014 = vst [vmem:[%s13 + $0x8] sm:$0xff] %v1998
    %2015 = vst [vmem:[%s13 + $0x10] sm:$0xff] %v1999
    %2016 = vst [vmem:[%s13 + $0x18] sm:$0xff] %v2000
    %2017 = vst [vmem:[%s13 + $0x20] sm:$0xff] %v2001
    %2018 = vst [vmem:[%s13 + $0x28] sm:$0xff] %v2002
    %2019 = vst [vmem:[%s13 + $0x30] sm:$0xff] %v2003
    %2020 = vst [vmem:[%s13 + $0x38] sm:$0xff] %v2004
    %v2021 = vld [vmem:[%s9] sm:$0xff]
    %v2022 = vld [vmem:[%s9 + $0x8] sm:$0xff]
    %v2023 = vld [vmem:[%s9 + $0x10] sm:$0xf]
    %v2024 = vld [vmem:[%s9 + $0x14] sm:$0xff]
    %v2025 = vld [vmem:[%s9 + $0x1c] sm:$0xff]
    %v2026 = vld [vmem:[%s9 + $0x24] sm:$0xf]
    %v2027 = vld [vmem:[%s9 + $0x28] sm:$0xff]
    %v2028 = vld [vmem:[%s9 + $0x30] sm:$0xff]
    %v2029 = vld [vmem:[%s9 + $0x38] sm:$0xf]
    %v2030 = vld [vmem:[%s9 + $0x3c] sm:$0xff]
    %v2031 = vld [vmem:[%s9 + $0x44] sm:$0xff]
    %v2032 = vld [vmem:[%s9 + $0x4c] sm:$0xf]
    %v2033 = vld [vmem:[%s9 + $0x50] sm:$0xff]
    %v2034 = vld [vmem:[%s9 + $0x58] sm:$0xff]
    %v2035 = vld [vmem:[%s9 + $0x60] sm:$0xf]
    %v2036 = vld [vmem:[%s9 + $0x64] sm:$0xff]
    %v2037 = vld [vmem:[%s9 + $0x6c] sm:$0xff]
    %v2038 = vld [vmem:[%s9 + $0x74] sm:$0xf]
    %v2039 = vld [vmem:[%s9 + $0x78] sm:$0xff]
    %v2040 = vld [vmem:[%s9 + $0x80] sm:$0xff]
    %v2041 = vld [vmem:[%s9 + $0x88] sm:$0xf]
    %v2042 = vld [vmem:[%s9 + $0x8c] sm:$0xff]
    %v2043 = vld [vmem:[%s9 + $0x94] sm:$0xff]
    %v2044 = vld [vmem:[%s9 + $0x9c] sm:$0xf]
    %v2045 = vld [vmem:[%s9 + $0xa0] sm:$0xff]
    %v2046 = vld [vmem:[%s9 + $0xa8] sm:$0xff]
    %v2047 = vld [vmem:[%s9 + $0xb0] sm:$0xf]
    %v2048 = vld [vmem:[%s9 + $0xb4] sm:$0xff]
    %v2049 = vld [vmem:[%s9 + $0xbc] sm:$0xff]
    %v2050 = vld [vmem:[%s9 + $0xc4] sm:$0xf]
    %v2051 = vld [vmem:[%s9 + $0xc8] sm:$0xff]
    %v2052 = vld [vmem:[%s9 + $0xd0] sm:$0xff]
    %v2053 = vld [vmem:[%s9 + $0xd8] sm:$0xf]
    %v2054 = vld [vmem:[%s9 + $0xdc] sm:$0xff]
    %v2055 = vld [vmem:[%s9 + $0xe4] sm:$0xff]
    %v2056 = vld [vmem:[%s9 + $0xec] sm:$0xf]
    %v2057 = vld [vmem:[%s9 + $0xf0] sm:$0xff]
    %v2058 = vld [vmem:[%s9 + $0xf8] sm:$0xff]
    %v2059 = vld [vmem:[%s9 + $0x100] sm:$0xf]
    %v2060 = vld [vmem:[%s9 + $0x104] sm:$0xff]
    %v2061 = vld [vmem:[%s9 + $0x10c] sm:$0xff]
    %v2062 = vld [vmem:[%s9 + $0x114] sm:$0xf]
    %v2063 = vld [vmem:[%s9 + $0x118] sm:$0xff]
    %v2064 = vld [vmem:[%s9 + $0x120] sm:$0xff]
    %v2065 = vld [vmem:[%s9 + $0x128] sm:$0xf]
    %v2066 = vld [vmem:[%s9 + $0x12c] sm:$0xff]
    %v2067 = vld [vmem:[%s9 + $0x134] sm:$0xff]
    %v2068 = vld [vmem:[%s9 + $0x13c] sm:$0xf]
    %v2069 = vld [vmem:[%s10] sm:$0x1f]
    %v2071 = vlaneseq
    %v2072 = vshrl.u32 %v2071, 7
    %v2073 = vsub.s32 0, %v2072
    %v2074 = vrot.slane %v2069, %v2073
    %v2075 = vlaneseq
    %v2076 = vshrl.u32 %v2075, 7
    %v2077 = vsub.s32 1, %v2076
    %v2078 = vrot.slane %v2069, %v2077
    %v2079 = vlaneseq
    %v2080 = vshrl.u32 %v2079, 7
    %v2081 = vsub.s32 2, %v2080
    %v2082 = vrot.slane %v2069, %v2081
    %v2083 = vlaneseq
    %v2084 = vshrl.u32 %v2083, 7
    %v2085 = vsub.s32 3, %v2084
    %v2086 = vrot.slane %v2069, %v2085
    %v2087 = vlaneseq
    %v2088 = vshrl.u32 %v2087, 7
    %v2089 = vsub.s32 4, %v2088
    %v2090 = vrot.slane %v2069, %v2089
    %v2144 = vunpack.c.l.b16 %v2021
    %v2145 = vunpack.c.h.b16 %v2021
    %v2146 = vunpack.c.l.b16 %v2022
    %v2147 = vunpack.c.h.b16 %v2022
    %v2148 = vunpack.c.l.b16 %v2023
    %v2149 = vunpack.c.l.b16 %v2024
    %v2150 = vunpack.c.h.b16 %v2024
    %v2151 = vunpack.c.l.b16 %v2025
    %v2152 = vunpack.c.h.b16 %v2025
    %v2153 = vunpack.c.l.b16 %v2026
    %v2154 = vunpack.c.l.b16 %v2027
    %v2155 = vunpack.c.h.b16 %v2027
    %v2156 = vunpack.c.l.b16 %v2028
    %v2157 = vunpack.c.h.b16 %v2028
    %v2158 = vunpack.c.l.b16 %v2029
    %v2159 = vunpack.c.l.b16 %v2030
    %v2160 = vunpack.c.h.b16 %v2030
    %v2161 = vunpack.c.l.b16 %v2031
    %v2162 = vunpack.c.h.b16 %v2031
    %v2163 = vunpack.c.l.b16 %v2032
    %v2164 = vunpack.c.l.b16 %v2033
    %v2165 = vunpack.c.h.b16 %v2033
    %v2166 = vunpack.c.l.b16 %v2034
    %v2167 = vunpack.c.h.b16 %v2034
    %v2168 = vunpack.c.l.b16 %v2035
    %v2169 = vunpack.c.l.b16 %v2036
    %v2170 = vunpack.c.h.b16 %v2036
    %v2171 = vunpack.c.l.b16 %v2037
    %v2172 = vunpack.c.h.b16 %v2037
    %v2173 = vunpack.c.l.b16 %v2038
    %v2174 = vunpack.c.l.b16 %v2039
    %v2175 = vunpack.c.h.b16 %v2039
    %v2176 = vunpack.c.l.b16 %v2040
    %v2177 = vunpack.c.h.b16 %v2040
    %v2178 = vunpack.c.l.b16 %v2041
    %v2179 = vunpack.c.l.b16 %v2042
    %v2180 = vunpack.c.h.b16 %v2042
    %v2181 = vunpack.c.l.b16 %v2043
    %v2182 = vunpack.c.h.b16 %v2043
    %v2183 = vunpack.c.l.b16 %v2044
    %v2184 = vunpack.c.l.b16 %v2045
    %v2185 = vunpack.c.h.b16 %v2045
    %v2186 = vunpack.c.l.b16 %v2046
    %v2187 = vunpack.c.h.b16 %v2046
    %v2188 = vunpack.c.l.b16 %v2047
    %v2189 = vunpack.c.l.b16 %v2048
    %v2190 = vunpack.c.h.b16 %v2048
    %v2191 = vunpack.c.l.b16 %v2049
    %v2192 = vunpack.c.h.b16 %v2049
    %v2193 = vunpack.c.l.b16 %v2050
    %v2194 = vunpack.c.l.b16 %v2051
    %v2195 = vunpack.c.h.b16 %v2051
    %v2196 = vunpack.c.l.b16 %v2052
    %v2197 = vunpack.c.h.b16 %v2052
    %v2198 = vunpack.c.l.b16 %v2053
    %v2199 = vunpack.c.l.b16 %v2054
    %v2200 = vunpack.c.h.b16 %v2054
    %v2201 = vunpack.c.l.b16 %v2055
    %v2202 = vunpack.c.h.b16 %v2055
    %v2203 = vunpack.c.l.b16 %v2056
    %v2204 = vunpack.c.l.b16 %v2057
    %v2205 = vunpack.c.h.b16 %v2057
    %v2206 = vunpack.c.l.b16 %v2058
    %v2207 = vunpack.c.h.b16 %v2058
    %v2208 = vunpack.c.l.b16 %v2059
    %v2209 = vunpack.c.l.b16 %v2060
    %v2210 = vunpack.c.h.b16 %v2060
    %v2211 = vunpack.c.l.b16 %v2061
    %v2212 = vunpack.c.h.b16 %v2061
    %v2213 = vunpack.c.l.b16 %v2062
    %v2214 = vunpack.c.l.b16 %v2063
    %v2215 = vunpack.c.h.b16 %v2063
    %v2216 = vunpack.c.l.b16 %v2064
    %v2217 = vunpack.c.h.b16 %v2064
    %v2218 = vunpack.c.l.b16 %v2065
    %v2219 = vunpack.c.l.b16 %v2066
    %v2220 = vunpack.c.h.b16 %v2066
    %v2221 = vunpack.c.l.b16 %v2067
    %v2222 = vunpack.c.h.b16 %v2067
    %v2223 = vunpack.c.l.b16 %v2068
    %v2224 = vpack.c.b16 %v2149, %v2144
    %v2225 = vpack.c.b16 %v2150, %v2145
    %v2226 = vpack.c.b16 %v2151, %v2146
    %v2227 = vpack.c.b16 %v2152, %v2147
    %v2228 = vpack.c.b16 %v2153, %v2148
    %v2229 = vpack.c.b16 %v2159, %v2154
    %v2230 = vpack.c.b16 %v2160, %v2155
    %v2231 = vpack.c.b16 %v2161, %v2156
    %v2232 = vpack.c.b16 %v2162, %v2157
    %v2233 = vpack.c.b16 %v2163, %v2158
    %v2234 = vpack.c.b16 %v2169, %v2164
    %v2235 = vpack.c.b16 %v2170, %v2165
    %v2236 = vpack.c.b16 %v2171, %v2166
    %v2237 = vpack.c.b16 %v2172, %v2167
    %v2238 = vpack.c.b16 %v2173, %v2168
    %v2239 = vpack.c.b16 %v2179, %v2174
    %v2240 = vpack.c.b16 %v2180, %v2175
    %v2241 = vpack.c.b16 %v2181, %v2176
    %v2242 = vpack.c.b16 %v2182, %v2177
    %v2243 = vpack.c.b16 %v2183, %v2178
    %v2244 = vpack.c.b16 %v2189, %v2184
    %v2245 = vpack.c.b16 %v2190, %v2185
    %v2246 = vpack.c.b16 %v2191, %v2186
    %v2247 = vpack.c.b16 %v2192, %v2187
    %v2248 = vpack.c.b16 %v2193, %v2188
    %v2249 = vpack.c.b16 %v2199, %v2194
    %v2250 = vpack.c.b16 %v2200, %v2195
    %v2251 = vpack.c.b16 %v2201, %v2196
    %v2252 = vpack.c.b16 %v2202, %v2197
    %v2253 = vpack.c.b16 %v2203, %v2198
    %v2254 = vpack.c.b16 %v2209, %v2204
    %v2255 = vpack.c.b16 %v2210, %v2205
    %v2256 = vpack.c.b16 %v2211, %v2206
    %v2257 = vpack.c.b16 %v2212, %v2207
    %v2258 = vpack.c.b16 %v2213, %v2208
    %v2259 = vpack.c.b16 %v2219, %v2214
    %v2260 = vpack.c.b16 %v2220, %v2215
    %v2261 = vpack.c.b16 %v2221, %v2216
    %v2262 = vpack.c.b16 %v2222, %v2217
    %v2263 = vpack.c.b16 %v2223, %v2218
    %2304 = vmatprep.subr.bf16.mxu0 %v2225
    %2305 = vmatpush1.bf16.msra.mxu0 %v2224
    %2306 = vmatprep.subr.bf16.mxu0 %v2230
    %2307 = vmatpush1.bf16.msra.mxu0 %v2229
    %2308 = vmatprep.subr.bf16.mxu0 %v2235
    %2309 = vmatpush1.bf16.msra.mxu0 %v2234
    %2310 = vmatprep.subr.bf16.mxu0 %v2240
    %2311 = vmatpush1.bf16.msra.mxu0 %v2239
    %2312 = vmatprep.subr.bf16.mxu0 %v2245
    %2313 = vmatpush1.bf16.msra.mxu0 %v2244
    %2314 = vmatprep.subr.bf16.mxu0 %v2250
    %2315 = vmatpush1.bf16.msra.mxu0 %v2249
    %2316 = vmatprep.subr.bf16.mxu0 %v2255
    %2317 = vmatpush1.bf16.msra.mxu0 %v2254
    %2318 = vmatprep.subr.bf16.mxu0 %v2260
    %2319 = vmatpush1.bf16.msra.mxu0 %v2259
    %2320 = vmatprep.subr.bf16.mxu0 0
    %2321 = vmatpush1.bf16.msra.mxu0 0
    %2322 = vmatprep.subr.bf16.mxu0 0
    %2323 = vmatpush1.bf16.msra.mxu0 0
    %2324 = vmatprep.subr.bf16.mxu0 0
    %2325 = vmatpush1.bf16.msra.mxu0 0
    %2326 = vmatprep.subr.bf16.mxu0 0
    %2327 = vmatpush1.bf16.msra.mxu0 0
    %2328 = vmatprep.subr.bf16.mxu0 0
    %2329 = vmatpush1.bf16.msra.mxu0 0
    %2330 = vmatprep.subr.bf16.mxu0 0
    %2331 = vmatpush1.bf16.msra.mxu0 0
    %2332 = vmatprep.subr.bf16.mxu0 0
    %2333 = vmatpush1.bf16.msra.mxu0 0
    %2334 = vmatprep.subr.bf16.mxu0 0
    %2335 = vmatpush1.bf16.msra.mxu0 0
    %2336 = vmatprep.mubr.bf16.mxu0 0
    %2337 = vmatmul.mubr.bf16.gmra.mrb[0].mxu0 %v1129
    %v2338 = vpop.f32.mrb[0].mxu0
    %v2339 = vadd.f32 %v2074, %v2338
    %v2340 = vpop.f32.mrb[0].mxu0
    %v2341 = vadd.f32 %v2078, %v2340
    %v2342 = vpop.f32.mrb[0].mxu0
    %v2343 = vadd.f32 %v2074, %v2342
    %v2344 = vpop.f32.mrb[0].mxu0
    %v2345 = vadd.f32 %v2078, %v2344
    %2346 = vdwg.mxu0
    %2347 = vmatprep.subr.bf16.mxu0 %v2227
    %2348 = vmatpush1.bf16.msra.mxu0 %v2226
    %2349 = vmatprep.subr.bf16.mxu0 %v2232
    %2350 = vmatpush1.bf16.msra.mxu0 %v2231
    %2351 = vmatprep.subr.bf16.mxu0 %v2237
    %2352 = vmatpush1.bf16.msra.mxu0 %v2236
    %2353 = vmatprep.subr.bf16.mxu0 %v2242
    %2354 = vmatpush1.bf16.msra.mxu0 %v2241
    %2355 = vmatprep.subr.bf16.mxu0 %v2247
    %2356 = vmatpush1.bf16.msra.mxu0 %v2246
    %2357 = vmatprep.subr.bf16.mxu0 %v2252
    %2358 = vmatpush1.bf16.msra.mxu0 %v2251
    %2359 = vmatprep.subr.bf16.mxu0 %v2257
    %2360 = vmatpush1.bf16.msra.mxu0 %v2256
    %2361 = vmatprep.subr.bf16.mxu0 %v2262
    %2362 = vmatpush1.bf16.msra.mxu0 %v2261
    %2363 = vmatprep.subr.bf16.mxu0 0
    %2364 = vmatpush1.bf16.msra.mxu0 0
    %2365 = vmatprep.subr.bf16.mxu0 0
    %2366 = vmatpush1.bf16.msra.mxu0 0
    %2367 = vmatprep.subr.bf16.mxu0 0
    %2368 = vmatpush1.bf16.msra.mxu0 0
    %2369 = vmatprep.subr.bf16.mxu0 0
    %2370 = vmatpush1.bf16.msra.mxu0 0
    %2371 = vmatprep.subr.bf16.mxu0 0
    %2372 = vmatpush1.bf16.msra.mxu0 0
    %2373 = vmatprep.subr.bf16.mxu0 0
    %2374 = vmatpush1.bf16.msra.mxu0 0
    %2375 = vmatprep.subr.bf16.mxu0 0
    %2376 = vmatpush1.bf16.msra.mxu0 0
    %2377 = vmatprep.subr.bf16.mxu0 0
    %2378 = vmatpush1.bf16.msra.mxu0 0
    %2379 = vmatprep.mubr.bf16.mxu0 0
    %2380 = vmatmul.mubr.bf16.gmra.mrb[0].mxu0 %v1129
    %v2381 = vpop.f32.mrb[0].mxu0
    %v2382 = vadd.f32 %v2082, %v2381
    %v2383 = vpop.f32.mrb[0].mxu0
    %v2384 = vadd.f32 %v2086, %v2383
    %v2385 = vpop.f32.mrb[0].mxu0
    %v2386 = vadd.f32 %v2082, %v2385
    %v2387 = vpop.f32.mrb[0].mxu0
    %v2388 = vadd.f32 %v2086, %v2387
    %2389 = vdwg.mxu0
    %2390 = vmatprep.subr.bf16.mxu0 0
    %2391 = vmatpush1.bf16.msra.mxu0 %v2228
    %2392 = vmatprep.subr.bf16.mxu0 0
    %2393 = vmatpush1.bf16.msra.mxu0 %v2233
    %2394 = vmatprep.subr.bf16.mxu0 0
    %2395 = vmatpush1.bf16.msra.mxu0 %v2238
    %2396 = vmatprep.subr.bf16.mxu0 0
    %2397 = vmatpush1.bf16.msra.mxu0 %v2243
    %2398 = vmatprep.subr.bf16.mxu0 0
    %2399 = vmatpush1.bf16.msra.mxu0 %v2248
    %2400 = vmatprep.subr.bf16.mxu0 0
    %2401 = vmatpush1.bf16.msra.mxu0 %v2253
    %2402 = vmatprep.subr.bf16.mxu0 0
    %2403 = vmatpush1.bf16.msra.mxu0 %v2258
    %2404 = vmatprep.subr.bf16.mxu0 0
    %2405 = vmatpush1.bf16.msra.mxu0 %v2263
    %2406 = vmatprep.subr.bf16.mxu0 0
    %2407 = vmatpush1.bf16.msra.mxu0 0
    %2408 = vmatprep.subr.bf16.mxu0 0
    %2409 = vmatpush1.bf16.msra.mxu0 0
    %2410 = vmatprep.subr.bf16.mxu0 0
    %2411 = vmatpush1.bf16.msra.mxu0 0
    %2412 = vmatprep.subr.bf16.mxu0 0
    %2413 = vmatpush1.bf16.msra.mxu0 0
    %2414 = vmatprep.subr.bf16.mxu0 0
    %2415 = vmatpush1.bf16.msra.mxu0 0
    %2416 = vmatprep.subr.bf16.mxu0 0
    %2417 = vmatpush1.bf16.msra.mxu0 0
    %2418 = vmatprep.subr.bf16.mxu0 0
    %2419 = vmatpush1.bf16.msra.mxu0 0
    %2420 = vmatprep.subr.bf16.mxu0 0
    %2421 = vmatpush1.bf16.msra.mxu0 0
    %2422 = vmatprep.mubr.bf16.mxu0 0
    %2423 = vmatmul.mubr.bf16.gmra.mrb[0].mxu0 %v1129
    %v2424 = vpop.f32.mrb[0].mxu0
    %v2425 = vadd.f32 %v2090, %v2424
    %v2426 = vpop.f32.mrb[0].mxu0
    %v2427 = vpop.f32.mrb[0].mxu0
    %v2428 = vadd.f32 %v2090, %v2427
    %v2429 = vpop.f32.mrb[0].mxu0
    %2430 = vdwg.mxu0
    %v2431 = vld [vmem:[#allocation13] sm:$0xff]
    %v2432 = vld [vmem:[#allocation13 + $0x8] sm:$0xff]
    %v2433 = vld [vmem:[#allocation13 + $0x10] sm:$0xf]
    %v2434 = vld [vmem:[#allocation13 + $0x14] sm:$0xff]
    %v2435 = vld [vmem:[#allocation13 + $0x1c] sm:$0xff]
    %v2436 = vld [vmem:[#allocation13 + $0x24] sm:$0xf]
    %v2437 = vld [vmem:[#allocation13 + $0x28] sm:$0xff]
    %v2438 = vld [vmem:[#allocation13 + $0x30] sm:$0xff]
    %v2439 = vld [vmem:[#allocation13 + $0x38] sm:$0xf]
    %v2440 = vld [vmem:[#allocation13 + $0x3c] sm:$0xff]
    %v2441 = vld [vmem:[#allocation13 + $0x44] sm:$0xff]
    %v2442 = vld [vmem:[#allocation13 + $0x4c] sm:$0xf]
    %v2443 = vld [vmem:[#allocation13 + $0x50] sm:$0xff]
    %v2444 = vld [vmem:[#allocation13 + $0x58] sm:$0xff]
    %v2445 = vld [vmem:[#allocation13 + $0x60] sm:$0xf]
    %v2446 = vld [vmem:[#allocation13 + $0x64] sm:$0xff]
    %v2447 = vld [vmem:[#allocation13 + $0x6c] sm:$0xff]
    %v2448 = vld [vmem:[#allocation13 + $0x74] sm:$0xf]
    %v2449 = vld [vmem:[#allocation13 + $0x78] sm:$0xff]
    %v2450 = vld [vmem:[#allocation13 + $0x80] sm:$0xff]
    %v2451 = vld [vmem:[#allocation13 + $0x88] sm:$0xf]
    %v2452 = vld [vmem:[#allocation13 + $0x8c] sm:$0xff]
    %v2453 = vld [vmem:[#allocation13 + $0x94] sm:$0xff]
    %v2454 = vld [vmem:[#allocation13 + $0x9c] sm:$0xf]
    %v2455 = vld [vmem:[#allocation13 + $0xa0] sm:$0xff]
    %v2456 = vld [vmem:[#allocation13 + $0xa8] sm:$0xff]
    %v2457 = vld [vmem:[#allocation13 + $0xb0] sm:$0xf]
    %v2458 = vld [vmem:[#allocation13 + $0xb4] sm:$0xff]
    %v2459 = vld [vmem:[#allocation13 + $0xbc] sm:$0xff]
    %v2460 = vld [vmem:[#allocation13 + $0xc4] sm:$0xf]
    %v2461 = vld [vmem:[#allocation13 + $0xc8] sm:$0xff]
    %v2462 = vld [vmem:[#allocation13 + $0xd0] sm:$0xff]
    %v2463 = vld [vmem:[#allocation13 + $0xd8] sm:$0xf]
    %v2464 = vld [vmem:[#allocation13 + $0xdc] sm:$0xff]
    %v2465 = vld [vmem:[#allocation13 + $0xe4] sm:$0xff]
    %v2466 = vld [vmem:[#allocation13 + $0xec] sm:$0xf]
    %v2467 = vld [vmem:[#allocation13 + $0xf0] sm:$0xff]
    %v2468 = vld [vmem:[#allocation13 + $0xf8] sm:$0xff]
    %v2469 = vld [vmem:[#allocation13 + $0x100] sm:$0xf]
    %v2470 = vld [vmem:[#allocation13 + $0x104] sm:$0xff]
    %v2471 = vld [vmem:[#allocation13 + $0x10c] sm:$0xff]
    %v2472 = vld [vmem:[#allocation13 + $0x114] sm:$0xf]
    %v2473 = vld [vmem:[#allocation13 + $0x118] sm:$0xff]
    %v2474 = vld [vmem:[#allocation13 + $0x120] sm:$0xff]
    %v2475 = vld [vmem:[#allocation13 + $0x128] sm:$0xf]
    %v2476 = vld [vmem:[#allocation13 + $0x12c] sm:$0xff]
    %v2477 = vld [vmem:[#allocation13 + $0x134] sm:$0xff]
    %v2478 = vld [vmem:[#allocation13 + $0x13c] sm:$0xf]
    %v2527 = vunpack.c.l.b16 %v2431
    %v2528 = vunpack.c.h.b16 %v2431
    %v2529 = vunpack.c.l.b16 %v2432
    %v2530 = vunpack.c.h.b16 %v2432
    %v2531 = vunpack.c.l.b16 %v2433
    %v2532 = vunpack.c.l.b16 %v2434
    %v2533 = vunpack.c.h.b16 %v2434
    %v2534 = vunpack.c.l.b16 %v2435
    %v2535 = vunpack.c.h.b16 %v2435
    %v2536 = vunpack.c.l.b16 %v2436
    %v2537 = vunpack.c.l.b16 %v2437
    %v2538 = vunpack.c.h.b16 %v2437
    %v2539 = vunpack.c.l.b16 %v2438
    %v2540 = vunpack.c.h.b16 %v2438
    %v2541 = vunpack.c.l.b16 %v2439
    %v2542 = vunpack.c.l.b16 %v2440
    %v2543 = vunpack.c.h.b16 %v2440
    %v2544 = vunpack.c.l.b16 %v2441
    %v2545 = vunpack.c.h.b16 %v2441
    %v2546 = vunpack.c.l.b16 %v2442
    %v2547 = vunpack.c.l.b16 %v2443
    %v2548 = vunpack.c.h.b16 %v2443
    %v2549 = vunpack.c.l.b16 %v2444
    %v2550 = vunpack.c.h.b16 %v2444
    %v2551 = vunpack.c.l.b16 %v2445
    %v2552 = vunpack.c.l.b16 %v2446
    %v2553 = vunpack.c.h.b16 %v2446
    %v2554 = vunpack.c.l.b16 %v2447
    %v2555 = vunpack.c.h.b16 %v2447
    %v2556 = vunpack.c.l.b16 %v2448
    %v2557 = vunpack.c.l.b16 %v2449
    %v2558 = vunpack.c.h.b16 %v2449
    %v2559 = vunpack.c.l.b16 %v2450
    %v2560 = vunpack.c.h.b16 %v2450
    %v2561 = vunpack.c.l.b16 %v2451
    %v2562 = vunpack.c.l.b16 %v2452
    %v2563 = vunpack.c.h.b16 %v2452
    %v2564 = vunpack.c.l.b16 %v2453
    %v2565 = vunpack.c.h.b16 %v2453
    %v2566 = vunpack.c.l.b16 %v2454
    %v2567 = vunpack.c.l.b16 %v2455
    %v2568 = vunpack.c.h.b16 %v2455
    %v2569 = vunpack.c.l.b16 %v2456
    %v2570 = vunpack.c.h.b16 %v2456
    %v2571 = vunpack.c.l.b16 %v2457
    %v2572 = vunpack.c.l.b16 %v2458
    %v2573 = vunpack.c.h.b16 %v2458
    %v2574 = vunpack.c.l.b16 %v2459
    %v2575 = vunpack.c.h.b16 %v2459
    %v2576 = vunpack.c.l.b16 %v2460
    %v2577 = vunpack.c.l.b16 %v2461
    %v2578 = vunpack.c.h.b16 %v2461
    %v2579 = vunpack.c.l.b16 %v2462
    %v2580 = vunpack.c.h.b16 %v2462
    %v2581 = vunpack.c.l.b16 %v2463
    %v2582 = vunpack.c.l.b16 %v2464
    %v2583 = vunpack.c.h.b16 %v2464
    %v2584 = vunpack.c.l.b16 %v2465
    %v2585 = vunpack.c.h.b16 %v2465
    %v2586 = vunpack.c.l.b16 %v2466
    %v2587 = vunpack.c.l.b16 %v2467
    %v2588 = vunpack.c.h.b16 %v2467
    %v2589 = vunpack.c.l.b16 %v2468
    %v2590 = vunpack.c.h.b16 %v2468
    %v2591 = vunpack.c.l.b16 %v2469
    %v2592 = vunpack.c.l.b16 %v2470
    %v2593 = vunpack.c.h.b16 %v2470
    %v2594 = vunpack.c.l.b16 %v2471
    %v2595 = vunpack.c.h.b16 %v2471
    %v2596 = vunpack.c.l.b16 %v2472
    %v2597 = vunpack.c.l.b16 %v2473
    %v2598 = vunpack.c.h.b16 %v2473
    %v2599 = vunpack.c.l.b16 %v2474
    %v2600 = vunpack.c.h.b16 %v2474
    %v2601 = vunpack.c.l.b16 %v2475
    %v2602 = vunpack.c.l.b16 %v2476
    %v2603 = vunpack.c.h.b16 %v2476
    %v2604 = vunpack.c.l.b16 %v2477
    %v2605 = vunpack.c.h.b16 %v2477
    %v2606 = vunpack.c.l.b16 %v2478
    %v2607 = vpack.c.b16 %v2532, %v2527
    %v2608 = vpack.c.b16 %v2533, %v2528
    %v2609 = vpack.c.b16 %v2534, %v2529
    %v2610 = vpack.c.b16 %v2535, %v2530
    %v2611 = vpack.c.b16 %v2536, %v2531
    %v2612 = vpack.c.b16 %v2542, %v2537
    %v2613 = vpack.c.b16 %v2543, %v2538
    %v2614 = vpack.c.b16 %v2544, %v2539
    %v2615 = vpack.c.b16 %v2545, %v2540
    %v2616 = vpack.c.b16 %v2546, %v2541
    %v2617 = vpack.c.b16 %v2552, %v2547
    %v2618 = vpack.c.b16 %v2553, %v2548
    %v2619 = vpack.c.b16 %v2554, %v2549
    %v2620 = vpack.c.b16 %v2555, %v2550
    %v2621 = vpack.c.b16 %v2556, %v2551
    %v2622 = vpack.c.b16 %v2562, %v2557
    %v2623 = vpack.c.b16 %v2563, %v2558
    %v2624 = vpack.c.b16 %v2564, %v2559
    %v2625 = vpack.c.b16 %v2565, %v2560
    %v2626 = vpack.c.b16 %v2566, %v2561
    %v2627 = vpack.c.b16 %v2572, %v2567
    %v2628 = vpack.c.b16 %v2573, %v2568
    %v2629 = vpack.c.b16 %v2574, %v2569
    %v2630 = vpack.c.b16 %v2575, %v2570
    %v2631 = vpack.c.b16 %v2576, %v2571
    %v2632 = vpack.c.b16 %v2582, %v2577
    %v2633 = vpack.c.b16 %v2583, %v2578
    %v2634 = vpack.c.b16 %v2584, %v2579
    %v2635 = vpack.c.b16 %v2585, %v2580
    %v2636 = vpack.c.b16 %v2586, %v2581
    %v2637 = vpack.c.b16 %v2592, %v2587
    %v2638 = vpack.c.b16 %v2593, %v2588
    %v2639 = vpack.c.b16 %v2594, %v2589
    %v2640 = vpack.c.b16 %v2595, %v2590
    %v2641 = vpack.c.b16 %v2596, %v2591
    %v2642 = vpack.c.b16 %v2602, %v2597
    %v2643 = vpack.c.b16 %v2603, %v2598
    %v2644 = vpack.c.b16 %v2604, %v2599
    %v2645 = vpack.c.b16 %v2605, %v2600
    %v2646 = vpack.c.b16 %v2606, %v2601
    %2687 = vmatprep.subr.bf16.mxu0 %v2608
    %2688 = vmatpush1.bf16.msra.mxu0 %v2607
    %2689 = vmatprep.subr.bf16.mxu0 %v2613
    %2690 = vmatpush1.bf16.msra.mxu0 %v2612
    %2691 = vmatprep.subr.bf16.mxu0 %v2618
    %2692 = vmatpush1.bf16.msra.mxu0 %v2617
    %2693 = vmatprep.subr.bf16.mxu0 %v2623
    %2694 = vmatpush1.bf16.msra.mxu0 %v2622
    %2695 = vmatprep.subr.bf16.mxu0 %v2628
    %2696 = vmatpush1.bf16.msra.mxu0 %v2627
    %2697 = vmatprep.subr.bf16.mxu0 %v2633
    %2698 = vmatpush1.bf16.msra.mxu0 %v2632
    %2699 = vmatprep.subr.bf16.mxu0 %v2638
    %2700 = vmatpush1.bf16.msra.mxu0 %v2637
    %2701 = vmatprep.subr.bf16.mxu0 %v2643
    %2702 = vmatpush1.bf16.msra.mxu0 %v2642
    %2703 = vmatprep.subr.bf16.mxu0 0
    %2704 = vmatpush1.bf16.msra.mxu0 0
    %2705 = vmatprep.subr.bf16.mxu0 0
    %2706 = vmatpush1.bf16.msra.mxu0 0
    %2707 = vmatprep.subr.bf16.mxu0 0
    %2708 = vmatpush1.bf16.msra.mxu0 0
    %2709 = vmatprep.subr.bf16.mxu0 0
    %2710 = vmatpush1.bf16.msra.mxu0 0
    %2711 = vmatprep.subr.bf16.mxu0 0
    %2712 = vmatpush1.bf16.msra.mxu0 0
    %2713 = vmatprep.subr.bf16.mxu0 0
    %2714 = vmatpush1.bf16.msra.mxu0 0
    %2715 = vmatprep.subr.bf16.mxu0 0
    %2716 = vmatpush1.bf16.msra.mxu0 0
    %2717 = vmatprep.subr.bf16.mxu0 0
    %2718 = vmatpush1.bf16.msra.mxu0 0
    %2719 = vmatprep.mubr.bf16.mxu0 0
    %2720 = vmatmul.mubr.bf16.gmra.mrb[0].mxu0 %v1242
    %v2721 = vpop.f32.mrb[0].mxu0
    %v2722 = vadd.f32 0.0, %v2721
    %v2723 = vpop.f32.mrb[0].mxu0
    %v2724 = vadd.f32 0.0, %v2723
    %v2725 = vpop.f32.mrb[0].mxu0
    %v2726 = vadd.f32 0.0, %v2725
    %v2727 = vpop.f32.mrb[0].mxu0
    %v2728 = vadd.f32 0.0, %v2727
    %2729 = vdwg.mxu0
    %2730 = vmatprep.subr.bf16.mxu0 %v2610
    %2731 = vmatpush1.bf16.msra.mxu0 %v2609
    %2732 = vmatprep.subr.bf16.mxu0 %v2615
    %2733 = vmatpush1.bf16.msra.mxu0 %v2614
    %2734 = vmatprep.subr.bf16.mxu0 %v2620
    %2735 = vmatpush1.bf16.msra.mxu0 %v2619
    %2736 = vmatprep.subr.bf16.mxu0 %v2625
    %2737 = vmatpush1.bf16.msra.mxu0 %v2624
    %2738 = vmatprep.subr.bf16.mxu0 %v2630
    %2739 = vmatpush1.bf16.msra.mxu0 %v2629
    %2740 = vmatprep.subr.bf16.mxu0 %v2635
    %2741 = vmatpush1.bf16.msra.mxu0 %v2634
    %2742 = vmatprep.subr.bf16.mxu0 %v2640
    %2743 = vmatpush1.bf16.msra.mxu0 %v2639
    %2744 = vmatprep.subr.bf16.mxu0 %v2645
    %2745 = vmatpush1.bf16.msra.mxu0 %v2644
    %2746 = vmatprep.subr.bf16.mxu0 0
    %2747 = vmatpush1.bf16.msra.mxu0 0
    %2748 = vmatprep.subr.bf16.mxu0 0
    %2749 = vmatpush1.bf16.msra.mxu0 0
    %2750 = vmatprep.subr.bf16.mxu0 0
    %2751 = vmatpush1.bf16.msra.mxu0 0
    %2752 = vmatprep.subr.bf16.mxu0 0
    %2753 = vmatpush1.bf16.msra.mxu0 0
    %2754 = vmatprep.subr.bf16.mxu0 0
    %2755 = vmatpush1.bf16.msra.mxu0 0
    %2756 = vmatprep.subr.bf16.mxu0 0
    %2757 = vmatpush1.bf16.msra.mxu0 0
    %2758 = vmatprep.subr.bf16.mxu0 0
    %2759 = vmatpush1.bf16.msra.mxu0 0
    %2760 = vmatprep.subr.bf16.mxu0 0
    %2761 = vmatpush1.bf16.msra.mxu0 0
    %2762 = vmatprep.mubr.bf16.mxu0 0
    %2763 = vmatmul.mubr.bf16.gmra.mrb[0].mxu0 %v1242
    %v2764 = vpop.f32.mrb[0].mxu0
    %v2765 = vadd.f32 0.0, %v2764
    %v2766 = vpop.f32.mrb[0].mxu0
    %v2767 = vadd.f32 0.0, %v2766
    %v2768 = vpop.f32.mrb[0].mxu0
    %v2769 = vadd.f32 0.0, %v2768
    %v2770 = vpop.f32.mrb[0].mxu0
    %v2771 = vadd.f32 0.0, %v2770
    %2772 = vdwg.mxu0
    %2773 = vmatprep.subr.bf16.mxu0 0
    %2774 = vmatpush1.bf16.msra.mxu0 %v2611
    %2775 = vmatprep.subr.bf16.mxu0 0
    %2776 = vmatpush1.bf16.msra.mxu0 %v2616
    %2777 = vmatprep.subr.bf16.mxu0 0
    %2778 = vmatpush1.bf16.msra.mxu0 %v2621
    %2779 = vmatprep.subr.bf16.mxu0 0
    %2780 = vmatpush1.bf16.msra.mxu0 %v2626
    %2781 = vmatprep.subr.bf16.mxu0 0
    %2782 = vmatpush1.bf16.msra.mxu0 %v2631
    %2783 = vmatprep.subr.bf16.mxu0 0
    %2784 = vmatpush1.bf16.msra.mxu0 %v2636
    %2785 = vmatprep.subr.bf16.mxu0 0
    %2786 = vmatpush1.bf16.msra.mxu0 %v2641
    %2787 = vmatprep.subr.bf16.mxu0 0
    %2788 = vmatpush1.bf16.msra.mxu0 %v2646
    %2789 = vmatprep.subr.bf16.mxu0 0
    %2790 = vmatpush1.bf16.msra.mxu0 0
    %2791 = vmatprep.subr.bf16.mxu0 0
    %2792 = vmatpush1.bf16.msra.mxu0 0
    %2793 = vmatprep.subr.bf16.mxu0 0
    %2794 = vmatpush1.bf16.msra.mxu0 0
    %2795 = vmatprep.subr.bf16.mxu0 0
    %2796 = vmatpush1.bf16.msra.mxu0 0
    %2797 = vmatprep.subr.bf16.mxu0 0
    %2798 = vmatpush1.bf16.msra.mxu0 0
    %2799 = vmatprep.subr.bf16.mxu0 0
    %2800 = vmatpush1.bf16.msra.mxu0 0
    %2801 = vmatprep.subr.bf16.mxu0 0
    %2802 = vmatpush1.bf16.msra.mxu0 0
    %2803 = vmatprep.subr.bf16.mxu0 0
    %2804 = vmatpush1.bf16.msra.mxu0 0
    %2805 = vmatprep.mubr.bf16.mxu0 0
    %2806 = vmatmul.mubr.bf16.gmra.mrb[0].mxu0 %v1242
    %v2807 = vpop.f32.mrb[0].mxu0
    %v2808 = vadd.f32 0.0, %v2807
    %v2809 = vpop.f32.mrb[0].mxu0
    %v2810 = vpop.f32.mrb[0].mxu0
    %v2811 = vadd.f32 0.0, %v2810
    %v2812 = vpop.f32.mrb[0].mxu0
    %2813 = vdwg.mxu0
    %v2814 = vmul.f32 %v2339, %v2722
    %v2815 = vmul.f32 %v2343, %v2726
    %v2816 = vmul.f32 %v2341, %v2724
    %v2817 = vmul.f32 %v2345, %v2728
    %v2818 = vadd.f32 %v2814, %v2816
    %v2819 = vadd.f32 %v2815, %v2817
    %v2820 = vmul.f32 %v2382, %v2765
    %v2821 = vmul.f32 %v2386, %v2769
    %v2822 = vadd.f32 %v2818, %v2820
    %v2823 = vadd.f32 %v2819, %v2821
    %v2824 = vmul.f32 %v2384, %v2767
    %v2825 = vmul.f32 %v2388, %v2771
    %v2826 = vadd.f32 %v2822, %v2824
    %v2827 = vadd.f32 %v2823, %v2825
    %v2828 = vmul.f32 %v2425, %v2808
    %v2829 = vmul.f32 %v2428, %v2811
    %v2830 = vadd.f32 %v2826, %v2828
    %v2831 = vadd.f32 %v2827, %v2829
    %v2832 = vlaneseq
    %v2833 = vand.u32 %v2832, 127
    %vm2834 = vcmp.lt.s32.totalorder %v2833, 10
    %v2835 = vsel %vm2834, %v2830, -inf
    %v2836 = vsel %vm2834, %v2831, -inf
    %2837 = vmax.xlane.f32.xlu0 %v2835
    %v2838 = vpop.xlane.xlu0 %2837
    %2839 = vmax.xlane.f32.xlu0 %v2836
    %v2840 = vpop.xlane.xlu0 %2839
    %v2841 = vsub.f32 %v2835, %v2838
    %v2842 = vsub.f32 %v2836, %v2840
    %v2843 = vmul.f32 %v2841, 1.442695
    %v2844 = vpow.pop %v2843
    %v2845 = vmul.f32 %v2842, 1.442695
    %v2846 = vpow.pop %v2845
    %2847 = vadd.xlane.f32.xlu0 %v2844
    %v2848 = vpop.xlane.xlu0 %2847
    %2849 = vadd.xlane.f32.xlu0 %v2846
    %v2850 = vpop.xlane.xlu0 %2849
    %v2851 = vlog2.pop %v2848
    %v2852 = vmul.f32 %v2851, 0.6931472
    %v2853 = vlog2.pop %v2850
    %v2854 = vmul.f32 %v2853, 0.6931472
    %v2855 = vsub.f32 %v2830, %v2838
    %v2856 = vsub.f32 %v2831, %v2840
    %v2857 = vsub.f32 %v2855, %v2852
    %v2858 = vsub.f32 %v2856, %v2854
    %2859 = vst [vmem:[%s12] sm:$0xff] %v2857
    %2860 = vst [vmem:[%s12 + $0x8] sm:$0xff] %v2858
    // Predicated region
    $region82: #{gsenn_forward.1} parent=1 // pred_check
      _
    $region83: #{gsenn_forward.1} parent=1 // pred_check_branch
      %2862 = sbr.rel (0) target = $region85
    $region84: #{gsenn_forward.1} parent=1 // pred_region
      _
    $region85: #{gsenn_forward.1} parent=1 // pred_fallthru
      _
    // Predicated region
    $region86: #{gsenn_forward.1} parent=1 // pred_check
      _
    $region87: #{gsenn_forward.1} parent=1 // pred_check_branch
      %2864 = sbr.rel (0) target = $region89
    $region88: #{gsenn_forward.1} parent=1 // pred_region
      _
    $region89: #{gsenn_forward.1} parent=1 // pred_fallthru
      _
    // Predicated region
    $region90: #{gsenn_forward.1} parent=1 // pred_check
      _
    $region91: #{gsenn_forward.1} parent=1 // pred_check_branch
      %2866 = sbr.rel (0) target = $region93
    $region92: #{gsenn_forward.1} parent=1 // pred_region
      _
    $region93: #{gsenn_forward.1} parent=1 // pred_fallthru
      _
    // Predicated region
    $region94: #{gsenn_forward.1} parent=1 // pred_check
      _
    $region95: #{gsenn_forward.1} parent=1 // pred_check_branch
      %2868 = sbr.rel (0) target = $region97
    $region96: #{gsenn_forward.1} parent=1 // pred_region
      _
    $region97: #{gsenn_forward.1} parent=1 // pred_fallthru
      _
    // Predicated region
    $region98: #{gsenn_forward.1} parent=1 // pred_check
      _
    $region99: #{gsenn_forward.1} parent=1 // pred_check_branch
      %2870 = sbr.rel (0) target = $region101
    $region100: #{gsenn_forward.1} parent=1 // pred_region
      _
    $region101: #{gsenn_forward.1} parent=1 // pred_fallthru
      _
    // Predicated region
    $region102: #{gsenn_forward.1} parent=1 // pred_check
      _
    $region103: #{gsenn_forward.1} parent=1 // pred_check_branch
      %2872 = sbr.rel (0) target = $region105
    $region104: #{gsenn_forward.1} parent=1 // pred_region
      _
    $region105: #{gsenn_forward.1} parent=1 // pred_fallthru
      _
    %2873 = vsyncpa [#allocation3], 1
    %2874 = vsyncpa [#allocation5], 1
    %2875 = vsyncpa [#allocation8], 1
    %2876 = vsyncpa [#allocation11], 1
    %2877 = vsyncpa [#allocation14], 1

</llo_original>
